<compile_context>
chip_gen: v6e
topology: v6e:2x2x1
jax: 0.10.0
libtpu: 0.0.40
codegen_flags: <defaults>
</compile_context>

<pallas_src>
import functools

import jax
import jax.numpy as jnp
from jax import lax
from jax.experimental import pallas as pl
from jax.experimental.pallas import tpu as pltpu

LANE = 128   # lane width
SUB = 8      # f32 sublane tile
TM = 2048    # rows per grid step: 2048*128*4B = 1 MiB per f32 input buffer


def _hinge_kernel(o_ref, t_ref, out_ref, *, valid_rows):
    """Per-block partial sums of relu(1 - o*t), folded to one (8,128) vreg."""
    o = o_ref[...].astype(jnp.float32)
    t = t_ref[...].astype(jnp.float32)
    hinge = jnp.maximum(1.0 - o * t, 0.0)

    # Mask rows beyond the true row count (ragged last grid block reads an
    # undefined out-of-bounds region; select, not arithmetic, so NaNs there
    # cannot leak through).
    rows = pl.program_id(0) * TM + lax.broadcasted_iota(jnp.int32, hinge.shape, 0)
    hinge = jnp.where(rows < valid_rows, hinge, 0.0)

    # VPU-only partial reduction: fold the (8,128) sublane-tile groups on top
    # of each other. The cross-lane collapse happens once, in JAX, on the tiny
    # (G*8, 128) output.
    out_ref[...] = jnp.sum(hinge.reshape(TM // SUB, SUB, LANE), axis=0)


def hinge_loss(output, target):
    """mean(relu(1 - output*target)) — matches the PyTorch HingeLoss.forward."""
    assert output.shape == target.shape
    n = output.size

    o_flat = output.reshape(-1)
    t_flat = target.reshape(-1)

    # Only pad the (rare) ragged lane tail, with 1.0 so relu(1 - 1*1) == 0.
    # No full-chunk padding and no dtype cast in the wrapper.
    lane_pad = (-n) % LANE
    if lane_pad:
        o_flat = jnp.pad(o_flat, (0, lane_pad), constant_values=1)
        t_flat = jnp.pad(t_flat, (0, lane_pad), constant_values=1)

    m = o_flat.size // LANE            # true number of 128-wide rows
    o2 = o_flat.reshape(m, LANE)
    t2 = t_flat.reshape(m, LANE)

    grid = (pl.cdiv(m, TM),)
    kernel = functools.partial(_hinge_kernel, valid_rows=m)

    partials = pl.pallas_call(
        kernel,
        out_shape=jax.ShapeDtypeStruct((grid[0] * SUB, LANE), jnp.float32),
        grid_spec=pltpu.PrefetchScalarGridSpec(
            num_scalar_prefetch=0,
            grid=grid,
            in_specs=[
                pl.BlockSpec((TM, LANE), lambda i: (i, 0)),
                pl.BlockSpec((TM, LANE), lambda i: (i, 0)),
            ],
            out_specs=pl.BlockSpec((SUB, LANE), lambda i: (i, 0)),
        ),
        compiler_params=pltpu.CompilerParams(
            dimension_semantics=("parallel",)),
    )(o2, t2)

    return jnp.sum(partials) / jnp.float32(n)


if __name__ == "__main__":
    key = jax.random.PRNGKey(0)
    k1, k2 = jax.random.split(key)
    # discriminator-style output and +/-1 style target, NCHW
    x_shape = (2, 4, 16, 16)
    output = jax.random.normal(k1, x_shape, dtype=jnp.float32)
    target = jnp.sign(jax.random.normal(k2, x_shape, dtype=jnp.float32))

    loss = jax.block_until_ready(hinge_loss(output, target))

    # reference in plain JAX
    ref = jnp.mean(jnp.maximum(1.0 - output * target, 0.0))
    assert jnp.allclose(loss, ref, rtol=1e-6, atol=1e-6), (loss, ref)

    print("KERNEL_OK")
</pallas_src>

<mosaic_0001>
module attributes {stable_mosaic.version = 11 : i64} {
  func.func @_hinge_kernel(%arg0: i32, %arg1: memref<2048x128xf32, #tpu.memory_space<vmem>>, %arg2: memref<2048x128xf32, #tpu.memory_space<vmem>>, %arg3: memref<8x128xf32, #tpu.memory_space<vmem>>) attributes {dimension_semantics = [#tpu.dimension_semantics<parallel>], iteration_bounds = array<i64: 1>, scalar_prefetch = 0 : i64, scratch_operands = 0 : i64, tpu.core_type = #tpu.core_type<tc>, window_params = [{transform_indices = @transform_0, window_bounds = array<i64: 2048, 128>}, {transform_indices = @transform_1, window_bounds = array<i64: 2048, 128>}, {transform_indices = @transform_2, window_bounds = array<i64: 8, 128>}]} {
    %c0 = arith.constant 0 : index
    %c0_0 = arith.constant 0 : index
    %0 = vector.load %arg1[%c0, %c0_0] : memref<2048x128xf32, #tpu.memory_space<vmem>>, vector<2048x128xf32>
    %c0_1 = arith.constant 0 : index
    %c0_2 = arith.constant 0 : index
    %1 = vector.load %arg2[%c0_1, %c0_2] : memref<2048x128xf32, #tpu.memory_space<vmem>>, vector<2048x128xf32>
    %2 = arith.mulf %0, %1 : vector<2048x128xf32>
    %cst = arith.constant 1.000000e+00 : f32
    %3 = vector.broadcast %cst : f32 to vector<2048x128xf32>
    %4 = arith.subf %3, %2 : vector<2048x128xf32>
    %cst_3 = arith.constant 0.000000e+00 : f32
    %5 = vector.broadcast %cst_3 : f32 to vector<2048x128xf32>
    %6 = arith.maximumf %4, %5 : vector<2048x128xf32>
    %c2048_i32 = arith.constant 2048 : i32
    %7 = arith.muli %arg0, %c2048_i32 : i32
    %8 = tpu.iota {dimensions = array<i32: 0>} : vector<2048x128xi32>
    %9 = vector.broadcast %7 : i32 to vector<2048x128xi32>
    %10 = arith.addi %9, %8 : vector<2048x128xi32>
    %c16_i32 = arith.constant 16 : i32
    %11 = vector.broadcast %c16_i32 : i32 to vector<2048x128xi32>
    %12 = arith.cmpi slt, %10, %11 : vector<2048x128xi32>
    %cst_4 = arith.constant 0.000000e+00 : f32
    %13 = vector.broadcast %cst_4 : f32 to vector<2048x128xf32>
    %14 = arith.select %12, %6, %13 : vector<2048x128xi1>, vector<2048x128xf32>
    %15 = vector.shape_cast %14 : vector<2048x128xf32> to vector<256x8x128xf32>
    %cst_5 = arith.constant dense<0.000000e+00> : vector<8x128xf32>
    %16 = vector.multi_reduction <add>, %15, %cst_5 [0] : vector<256x8x128xf32> to vector<8x128xf32>
    %c0_6 = arith.constant 0 : index
    %c0_7 = arith.constant 0 : index
    %17 = vector.load %arg3[%c0_6, %c0_7] : memref<8x128xf32, #tpu.memory_space<vmem>>, vector<8x128xf32>
    tpu.vector_store %arg3[%c0_6, %c0_7], %16 {strides = array<i32>} : memref<8x128xf32, #tpu.memory_space<vmem>>, vector<8x128xf32>,
    return
  }
  func.func @transform_0(%arg0: i32) -> (i32, i32) {
    %c0_i32 = arith.constant 0 : i32
    %c0_i32_0 = arith.constant 0 : i32
    return %arg0, %c0_i32 : i32, i32
  }
  func.func @transform_1(%arg0: i32) -> (i32, i32) {
    %c0_i32 = arith.constant 0 : i32
    %c0_i32_0 = arith.constant 0 : i32
    return %arg0, %c0_i32 : i32, i32
  }
  func.func @transform_2(%arg0: i32) -> (i32, i32) {
    %c0_i32 = arith.constant 0 : i32
    %c0_i32_0 = arith.constant 0 : i32
    return %arg0, %c0_i32 : i32, i32
  }
}

</mosaic_0001>

<llo_original>
// kernel: tpu_custom_call.1
$region0: #{tpu_custom_call.1}
  #allocation0 [shape = 'u32[]', space=smem, size = 0x4, offset = 0x4, fixed_abs, tag = 'smem constant byte address 0x4 - core index']
  #allocation1 [shape = 'u32[144,128]{1,0:T(1,128)}', space=vmem, size = 0x12000, scoped, tag = 'internal scratch']
  %s0 = inlined_call_operand.hbm [shape: f32[16,128], index: 0, kind: input, shape index: {}]
  %s1 = inlined_call_operand.hbm [shape: f32[16,128], index: 1, kind: input, shape index: {}]
  %s2 = inlined_call_operand.hbm [shape: f32[8,128], index: 2, kind: output, shape index: {}]
  %s3 = sld [smem:[#allocation0]]
  $region26: #{tpu_custom_call.1} parent=0
    _
  %s5 = ssub.s32 1, %s3
  %s6 = scalar_select 0, %s5, %s3
  $region1: #{tpu_custom_call.1} parent=0
    #allocation2 [shape = 'u8[1048576]{0}', space=vmem, size = 0x100000, scoped, tag = 'input window, operand 0, single buffered']
    #allocation3 [shape = 's32[1]{0}', space=sflag, size = 0x4, scoped, tag = 'scoped memory for tpu_custom_call.1']
    #allocation4 [shape = 's32[1]{0}', space=sflag, size = 0x4, scoped, tag = 'scoped memory for tpu_custom_call.1']
    #allocation5 [shape = 'u8[1048576]{0}', space=vmem, size = 0x100000, scoped, tag = 'input window, operand 1, single buffered']
    #allocation6 [shape = 's32[1]{0}', space=sflag, size = 0x4, scoped, tag = 'scoped memory for tpu_custom_call.1']
    #allocation7 [shape = 'u8[4096]{0}', space=vmem, size = 0x1000, scoped, tag = 'output window, operand 0, single buffered']
    %7 = vsyncpa [#allocation3], 0
    %8 = vsyncpa [#allocation6], 0
    %9 = vsyncpa [#allocation4], 0
    // Predicated region
    $region2: #{tpu_custom_call.1} parent=1 // pred_check
      _
    $region3: #{tpu_custom_call.1} parent=1 // pred_check_branch
      %11 = sbr.rel (0) target = $region5
    $region4: #{tpu_custom_call.1} parent=1 // pred_region
      %s13 = ssub.s32 32768, 256
      %14 = vsyncadd [#allocation3], %s13
      %s15 = sshll.u32 [#allocation2], 4
      %s16 = int_to_ptr.vmem [resolvable:$true] %s15
      %21 = dma.hbm_to_vmem [thread:$0]  %s0, 256, %s16, [#allocation3], 128, 128, 8
    $region5: #{tpu_custom_call.1} parent=1 // pred_fallthru
      _
    // Predicated region
    $region6: #{tpu_custom_call.1} parent=1 // pred_check
      _
    $region7: #{tpu_custom_call.1} parent=1 // pred_check_branch
      %23 = sbr.rel (0) target = $region9
    $region8: #{tpu_custom_call.1} parent=1 // pred_region
      %s25 = ssub.s32 32768, 256
      %26 = vsyncadd [#allocation6], %s25
      %s27 = sshll.u32 [#allocation5], 4
      %s28 = int_to_ptr.vmem [resolvable:$true] %s27
      %33 = dma.hbm_to_vmem [thread:$0]  %s1, 256, %s28, [#allocation6], 128, 128, 8
    $region9: #{tpu_custom_call.1} parent=1 // pred_fallthru
      _
    // Predicated region
    $region10: #{tpu_custom_call.1} parent=1 // pred_check
      _
    $region11: #{tpu_custom_call.1} parent=1 // pred_check_branch
      %35 = sbr.rel (0) target = $region13
    $region12: #{tpu_custom_call.1} parent=1 // pred_region
      %36 = dma.done [#allocation3], 32768
    $region13: #{tpu_custom_call.1} parent=1 // pred_fallthru
      _
    // Predicated region
    $region14: #{tpu_custom_call.1} parent=1 // pred_check
      _
    $region15: #{tpu_custom_call.1} parent=1 // pred_check_branch
      %38 = sbr.rel (0) target = $region17
    $region16: #{tpu_custom_call.1} parent=1 // pred_region
      %39 = dma.done [#allocation6], 32768
    $region17: #{tpu_custom_call.1} parent=1 // pred_fallthru
      _
    %v40 = vld [vmem:[#allocation2] sm:$0xff]
    %v41 = vld [vmem:[#allocation2 + $0x8] sm:$0xff]
    %v42 = vld [vmem:[#allocation2 + $0x10] sm:$0xff]
    %v43 = vld [vmem:[#allocation2 + $0x18] sm:$0xff]
    %v44 = vld [vmem:[#allocation2 + $0x20] sm:$0xff]
    %v45 = vld [vmem:[#allocation2 + $0x28] sm:$0xff]
    %v46 = vld [vmem:[#allocation2 + $0x30] sm:$0xff]
    %v47 = vld [vmem:[#allocation2 + $0x38] sm:$0xff]
    %v48 = vld [vmem:[#allocation2 + $0x40] sm:$0xff]
    %v49 = vld [vmem:[#allocation2 + $0x48] sm:$0xff]
    %v50 = vld [vmem:[#allocation2 + $0x50] sm:$0xff]
    %v51 = vld [vmem:[#allocation2 + $0x58] sm:$0xff]
    %v52 = vld [vmem:[#allocation2 + $0x60] sm:$0xff]
    %v53 = vld [vmem:[#allocation2 + $0x68] sm:$0xff]
    %v54 = vld [vmem:[#allocation2 + $0x70] sm:$0xff]
    %v55 = vld [vmem:[#allocation2 + $0x78] sm:$0xff]
    %v56 = vld [vmem:[#allocation2 + $0x80] sm:$0xff]
    %v57 = vld [vmem:[#allocation2 + $0x88] sm:$0xff]
    %v58 = vld [vmem:[#allocation2 + $0x90] sm:$0xff]
    %v59 = vld [vmem:[#allocation2 + $0x98] sm:$0xff]
    %v60 = vld [vmem:[#allocation2 + $0xa0] sm:$0xff]
    %v61 = vld [vmem:[#allocation2 + $0xa8] sm:$0xff]
    %v62 = vld [vmem:[#allocation2 + $0xb0] sm:$0xff]
    %v63 = vld [vmem:[#allocation2 + $0xb8] sm:$0xff]
    %v64 = vld [vmem:[#allocation2 + $0xc0] sm:$0xff]
    %v65 = vld [vmem:[#allocation2 + $0xc8] sm:$0xff]
    %v66 = vld [vmem:[#allocation2 + $0xd0] sm:$0xff]
    %v67 = vld [vmem:[#allocation2 + $0xd8] sm:$0xff]
    %v68 = vld [vmem:[#allocation2 + $0xe0] sm:$0xff]
    %v69 = vld [vmem:[#allocation2 + $0xe8] sm:$0xff]
    %v70 = vld [vmem:[#allocation2 + $0xf0] sm:$0xff]
    %v71 = vld [vmem:[#allocation2 + $0xf8] sm:$0xff]
    %v72 = vld [vmem:[#allocation2 + $0x100] sm:$0xff]
    %v73 = vld [vmem:[#allocation2 + $0x108] sm:$0xff]
    %v74 = vld [vmem:[#allocation2 + $0x110] sm:$0xff]
    %v75 = vld [vmem:[#allocation2 + $0x118] sm:$0xff]
    %v76 = vld [vmem:[#allocation2 + $0x120] sm:$0xff]
    %v77 = vld [vmem:[#allocation2 + $0x128] sm:$0xff]
    %v78 = vld [vmem:[#allocation2 + $0x130] sm:$0xff]
    %v79 = vld [vmem:[#allocation2 + $0x138] sm:$0xff]
    %v80 = vld [vmem:[#allocation2 + $0x140] sm:$0xff]
    %v81 = vld [vmem:[#allocation2 + $0x148] sm:$0xff]
    %v82 = vld [vmem:[#allocation2 + $0x150] sm:$0xff]
    %v83 = vld [vmem:[#allocation2 + $0x158] sm:$0xff]
    %v84 = vld [vmem:[#allocation2 + $0x160] sm:$0xff]
    %v85 = vld [vmem:[#allocation2 + $0x168] sm:$0xff]
    %v86 = vld [vmem:[#allocation2 + $0x170] sm:$0xff]
    %v87 = vld [vmem:[#allocation2 + $0x178] sm:$0xff]
    %v88 = vld [vmem:[#allocation2 + $0x180] sm:$0xff]
    %v89 = vld [vmem:[#allocation2 + $0x188] sm:$0xff]
    %v90 = vld [vmem:[#allocation2 + $0x190] sm:$0xff]
    %v91 = vld [vmem:[#allocation2 + $0x198] sm:$0xff]
    %v92 = vld [vmem:[#allocation2 + $0x1a0] sm:$0xff]
    %v93 = vld [vmem:[#allocation2 + $0x1a8] sm:$0xff]
    %v94 = vld [vmem:[#allocation2 + $0x1b0] sm:$0xff]
    %v95 = vld [vmem:[#allocation2 + $0x1b8] sm:$0xff]
    %v96 = vld [vmem:[#allocation2 + $0x1c0] sm:$0xff]
    %v97 = vld [vmem:[#allocation2 + $0x1c8] sm:$0xff]
    %v98 = vld [vmem:[#allocation2 + $0x1d0] sm:$0xff]
    %v99 = vld [vmem:[#allocation2 + $0x1d8] sm:$0xff]
    %v100 = vld [vmem:[#allocation2 + $0x1e0] sm:$0xff]
    %v101 = vld [vmem:[#allocation2 + $0x1e8] sm:$0xff]
    %v102 = vld [vmem:[#allocation2 + $0x1f0] sm:$0xff]
    %v103 = vld [vmem:[#allocation2 + $0x1f8] sm:$0xff]
    %v104 = vld [vmem:[#allocation2 + $0x200] sm:$0xff]
    %v105 = vld [vmem:[#allocation2 + $0x208] sm:$0xff]
    %v106 = vld [vmem:[#allocation2 + $0x210] sm:$0xff]
    %v107 = vld [vmem:[#allocation2 + $0x218] sm:$0xff]
    %v108 = vld [vmem:[#allocation2 + $0x220] sm:$0xff]
    %v109 = vld [vmem:[#allocation2 + $0x228] sm:$0xff]
    %v110 = vld [vmem:[#allocation2 + $0x230] sm:$0xff]
    %v111 = vld [vmem:[#allocation2 + $0x238] sm:$0xff]
    %v112 = vld [vmem:[#allocation2 + $0x240] sm:$0xff]
    %v113 = vld [vmem:[#allocation2 + $0x248] sm:$0xff]
    %v114 = vld [vmem:[#allocation2 + $0x250] sm:$0xff]
    %v115 = vld [vmem:[#allocation2 + $0x258] sm:$0xff]
    %v116 = vld [vmem:[#allocation2 + $0x260] sm:$0xff]
    %v117 = vld [vmem:[#allocation2 + $0x268] sm:$0xff]
    %v118 = vld [vmem:[#allocation2 + $0x270] sm:$0xff]
    %v119 = vld [vmem:[#allocation2 + $0x278] sm:$0xff]
    %v120 = vld [vmem:[#allocation2 + $0x280] sm:$0xff]
    %v121 = vld [vmem:[#allocation2 + $0x288] sm:$0xff]
    %v122 = vld [vmem:[#allocation2 + $0x290] sm:$0xff]
    %v123 = vld [vmem:[#allocation2 + $0x298] sm:$0xff]
    %v124 = vld [vmem:[#allocation2 + $0x2a0] sm:$0xff]
    %v125 = vld [vmem:[#allocation2 + $0x2a8] sm:$0xff]
    %v126 = vld [vmem:[#allocation2 + $0x2b0] sm:$0xff]
    %v127 = vld [vmem:[#allocation2 + $0x2b8] sm:$0xff]
    %v128 = vld [vmem:[#allocation2 + $0x2c0] sm:$0xff]
    %v129 = vld [vmem:[#allocation2 + $0x2c8] sm:$0xff]
    %v130 = vld [vmem:[#allocation2 + $0x2d0] sm:$0xff]
    %v131 = vld [vmem:[#allocation2 + $0x2d8] sm:$0xff]
    %v132 = vld [vmem:[#allocation2 + $0x2e0] sm:$0xff]
    %v133 = vld [vmem:[#allocation2 + $0x2e8] sm:$0xff]
    %v134 = vld [vmem:[#allocation2 + $0x2f0] sm:$0xff]
    %v135 = vld [vmem:[#allocation2 + $0x2f8] sm:$0xff]
    %v136 = vld [vmem:[#allocation2 + $0x300] sm:$0xff]
    %v137 = vld [vmem:[#allocation2 + $0x308] sm:$0xff]
    %v138 = vld [vmem:[#allocation2 + $0x310] sm:$0xff]
    %v139 = vld [vmem:[#allocation2 + $0x318] sm:$0xff]
    %v140 = vld [vmem:[#allocation2 + $0x320] sm:$0xff]
    %v141 = vld [vmem:[#allocation2 + $0x328] sm:$0xff]
    %v142 = vld [vmem:[#allocation2 + $0x330] sm:$0xff]
    %v143 = vld [vmem:[#allocation2 + $0x338] sm:$0xff]
    %v144 = vld [vmem:[#allocation2 + $0x340] sm:$0xff]
    %v145 = vld [vmem:[#allocation2 + $0x348] sm:$0xff]
    %v146 = vld [vmem:[#allocation2 + $0x350] sm:$0xff]
    %v147 = vld [vmem:[#allocation2 + $0x358] sm:$0xff]
    %v148 = vld [vmem:[#allocation2 + $0x360] sm:$0xff]
    %v149 = vld [vmem:[#allocation2 + $0x368] sm:$0xff]
    %v150 = vld [vmem:[#allocation2 + $0x370] sm:$0xff]
    %v151 = vld [vmem:[#allocation2 + $0x378] sm:$0xff]
    %v152 = vld [vmem:[#allocation2 + $0x380] sm:$0xff]
    %v153 = vld [vmem:[#allocation2 + $0x388] sm:$0xff]
    %v154 = vld [vmem:[#allocation2 + $0x390] sm:$0xff]
    %v155 = vld [vmem:[#allocation2 + $0x398] sm:$0xff]
    %v156 = vld [vmem:[#allocation2 + $0x3a0] sm:$0xff]
    %v157 = vld [vmem:[#allocation2 + $0x3a8] sm:$0xff]
    %v158 = vld [vmem:[#allocation2 + $0x3b0] sm:$0xff]
    %v159 = vld [vmem:[#allocation2 + $0x3b8] sm:$0xff]
    %v160 = vld [vmem:[#allocation2 + $0x3c0] sm:$0xff]
    %v161 = vld [vmem:[#allocation2 + $0x3c8] sm:$0xff]
    %v162 = vld [vmem:[#allocation2 + $0x3d0] sm:$0xff]
    %v163 = vld [vmem:[#allocation2 + $0x3d8] sm:$0xff]
    %v164 = vld [vmem:[#allocation2 + $0x3e0] sm:$0xff]
    %v165 = vld [vmem:[#allocation2 + $0x3e8] sm:$0xff]
    %v166 = vld [vmem:[#allocation2 + $0x3f0] sm:$0xff]
    %v167 = vld [vmem:[#allocation2 + $0x3f8] sm:$0xff]
    %v168 = vld [vmem:[#allocation2 + $0x400] sm:$0xff]
    %v169 = vld [vmem:[#allocation2 + $0x408] sm:$0xff]
    %v170 = vld [vmem:[#allocation2 + $0x410] sm:$0xff]
    %v171 = vld [vmem:[#allocation2 + $0x418] sm:$0xff]
    %v172 = vld [vmem:[#allocation2 + $0x420] sm:$0xff]
    %v173 = vld [vmem:[#allocation2 + $0x428] sm:$0xff]
    %v174 = vld [vmem:[#allocation2 + $0x430] sm:$0xff]
    %v175 = vld [vmem:[#allocation2 + $0x438] sm:$0xff]
    %v176 = vld [vmem:[#allocation2 + $0x440] sm:$0xff]
    %v177 = vld [vmem:[#allocation2 + $0x448] sm:$0xff]
    %v178 = vld [vmem:[#allocation2 + $0x450] sm:$0xff]
    %v179 = vld [vmem:[#allocation2 + $0x458] sm:$0xff]
    %v180 = vld [vmem:[#allocation2 + $0x460] sm:$0xff]
    %v181 = vld [vmem:[#allocation2 + $0x468] sm:$0xff]
    %v182 = vld [vmem:[#allocation2 + $0x470] sm:$0xff]
    %v183 = vld [vmem:[#allocation2 + $0x478] sm:$0xff]
    %v184 = vld [vmem:[#allocation2 + $0x480] sm:$0xff]
    %v185 = vld [vmem:[#allocation2 + $0x488] sm:$0xff]
    %v186 = vld [vmem:[#allocation2 + $0x490] sm:$0xff]
    %v187 = vld [vmem:[#allocation2 + $0x498] sm:$0xff]
    %v188 = vld [vmem:[#allocation2 + $0x4a0] sm:$0xff]
    %v189 = vld [vmem:[#allocation2 + $0x4a8] sm:$0xff]
    %v190 = vld [vmem:[#allocation2 + $0x4b0] sm:$0xff]
    %v191 = vld [vmem:[#allocation2 + $0x4b8] sm:$0xff]
    %v192 = vld [vmem:[#allocation2 + $0x4c0] sm:$0xff]
    %v193 = vld [vmem:[#allocation2 + $0x4c8] sm:$0xff]
    %v194 = vld [vmem:[#allocation2 + $0x4d0] sm:$0xff]
    %v195 = vld [vmem:[#allocation2 + $0x4d8] sm:$0xff]
    %v196 = vld [vmem:[#allocation2 + $0x4e0] sm:$0xff]
    %v197 = vld [vmem:[#allocation2 + $0x4e8] sm:$0xff]
    %v198 = vld [vmem:[#allocation2 + $0x4f0] sm:$0xff]
    %v199 = vld [vmem:[#allocation2 + $0x4f8] sm:$0xff]
    %v200 = vld [vmem:[#allocation2 + $0x500] sm:$0xff]
    %v201 = vld [vmem:[#allocation2 + $0x508] sm:$0xff]
    %v202 = vld [vmem:[#allocation2 + $0x510] sm:$0xff]
    %v203 = vld [vmem:[#allocation2 + $0x518] sm:$0xff]
    %v204 = vld [vmem:[#allocation2 + $0x520] sm:$0xff]
    %v205 = vld [vmem:[#allocation2 + $0x528] sm:$0xff]
    %v206 = vld [vmem:[#allocation2 + $0x530] sm:$0xff]
    %v207 = vld [vmem:[#allocation2 + $0x538] sm:$0xff]
    %v208 = vld [vmem:[#allocation2 + $0x540] sm:$0xff]
    %v209 = vld [vmem:[#allocation2 + $0x548] sm:$0xff]
    %v210 = vld [vmem:[#allocation2 + $0x550] sm:$0xff]
    %v211 = vld [vmem:[#allocation2 + $0x558] sm:$0xff]
    %v212 = vld [vmem:[#allocation2 + $0x560] sm:$0xff]
    %v213 = vld [vmem:[#allocation2 + $0x568] sm:$0xff]
    %v214 = vld [vmem:[#allocation2 + $0x570] sm:$0xff]
    %v215 = vld [vmem:[#allocation2 + $0x578] sm:$0xff]
    %v216 = vld [vmem:[#allocation2 + $0x580] sm:$0xff]
    %v217 = vld [vmem:[#allocation2 + $0x588] sm:$0xff]
    %v218 = vld [vmem:[#allocation2 + $0x590] sm:$0xff]
    %v219 = vld [vmem:[#allocation2 + $0x598] sm:$0xff]
    %v220 = vld [vmem:[#allocation2 + $0x5a0] sm:$0xff]
    %v221 = vld [vmem:[#allocation2 + $0x5a8] sm:$0xff]
    %v222 = vld [vmem:[#allocation2 + $0x5b0] sm:$0xff]
    %v223 = vld [vmem:[#allocation2 + $0x5b8] sm:$0xff]
    %v224 = vld [vmem:[#allocation2 + $0x5c0] sm:$0xff]
    %v225 = vld [vmem:[#allocation2 + $0x5c8] sm:$0xff]
    %v226 = vld [vmem:[#allocation2 + $0x5d0] sm:$0xff]
    %v227 = vld [vmem:[#allocation2 + $0x5d8] sm:$0xff]
    %v228 = vld [vmem:[#allocation2 + $0x5e0] sm:$0xff]
    %v229 = vld [vmem:[#allocation2 + $0x5e8] sm:$0xff]
    %v230 = vld [vmem:[#allocation2 + $0x5f0] sm:$0xff]
    %v231 = vld [vmem:[#allocation2 + $0x5f8] sm:$0xff]
    %v232 = vld [vmem:[#allocation2 + $0x600] sm:$0xff]
    %v233 = vld [vmem:[#allocation2 + $0x608] sm:$0xff]
    %v234 = vld [vmem:[#allocation2 + $0x610] sm:$0xff]
    %v235 = vld [vmem:[#allocation2 + $0x618] sm:$0xff]
    %v236 = vld [vmem:[#allocation2 + $0x620] sm:$0xff]
    %v237 = vld [vmem:[#allocation2 + $0x628] sm:$0xff]
    %v238 = vld [vmem:[#allocation2 + $0x630] sm:$0xff]
    %v239 = vld [vmem:[#allocation2 + $0x638] sm:$0xff]
    %v240 = vld [vmem:[#allocation2 + $0x640] sm:$0xff]
    %v241 = vld [vmem:[#allocation2 + $0x648] sm:$0xff]
    %v242 = vld [vmem:[#allocation2 + $0x650] sm:$0xff]
    %v243 = vld [vmem:[#allocation2 + $0x658] sm:$0xff]
    %v244 = vld [vmem:[#allocation2 + $0x660] sm:$0xff]
    %v245 = vld [vmem:[#allocation2 + $0x668] sm:$0xff]
    %v246 = vld [vmem:[#allocation2 + $0x670] sm:$0xff]
    %v247 = vld [vmem:[#allocation2 + $0x678] sm:$0xff]
    %v248 = vld [vmem:[#allocation2 + $0x680] sm:$0xff]
    %v249 = vld [vmem:[#allocation2 + $0x688] sm:$0xff]
    %v250 = vld [vmem:[#allocation2 + $0x690] sm:$0xff]
    %v251 = vld [vmem:[#allocation2 + $0x698] sm:$0xff]
    %v252 = vld [vmem:[#allocation2 + $0x6a0] sm:$0xff]
    %v253 = vld [vmem:[#allocation2 + $0x6a8] sm:$0xff]
    %v254 = vld [vmem:[#allocation2 + $0x6b0] sm:$0xff]
    %v255 = vld [vmem:[#allocation2 + $0x6b8] sm:$0xff]
    %v256 = vld [vmem:[#allocation2 + $0x6c0] sm:$0xff]
    %v257 = vld [vmem:[#allocation2 + $0x6c8] sm:$0xff]
    %v258 = vld [vmem:[#allocation2 + $0x6d0] sm:$0xff]
    %v259 = vld [vmem:[#allocation2 + $0x6d8] sm:$0xff]
    %v260 = vld [vmem:[#allocation2 + $0x6e0] sm:$0xff]
    %v261 = vld [vmem:[#allocation2 + $0x6e8] sm:$0xff]
    %v262 = vld [vmem:[#allocation2 + $0x6f0] sm:$0xff]
    %v263 = vld [vmem:[#allocation2 + $0x6f8] sm:$0xff]
    %v264 = vld [vmem:[#allocation2 + $0x700] sm:$0xff]
    %v265 = vld [vmem:[#allocation2 + $0x708] sm:$0xff]
    %v266 = vld [vmem:[#allocation2 + $0x710] sm:$0xff]
    %v267 = vld [vmem:[#allocation2 + $0x718] sm:$0xff]
    %v268 = vld [vmem:[#allocation2 + $0x720] sm:$0xff]
    %v269 = vld [vmem:[#allocation2 + $0x728] sm:$0xff]
    %v270 = vld [vmem:[#allocation2 + $0x730] sm:$0xff]
    %v271 = vld [vmem:[#allocation2 + $0x738] sm:$0xff]
    %v272 = vld [vmem:[#allocation2 + $0x740] sm:$0xff]
    %v273 = vld [vmem:[#allocation2 + $0x748] sm:$0xff]
    %v274 = vld [vmem:[#allocation2 + $0x750] sm:$0xff]
    %v275 = vld [vmem:[#allocation2 + $0x758] sm:$0xff]
    %v276 = vld [vmem:[#allocation2 + $0x760] sm:$0xff]
    %v277 = vld [vmem:[#allocation2 + $0x768] sm:$0xff]
    %v278 = vld [vmem:[#allocation2 + $0x770] sm:$0xff]
    %v279 = vld [vmem:[#allocation2 + $0x778] sm:$0xff]
    %v280 = vld [vmem:[#allocation2 + $0x780] sm:$0xff]
    %v281 = vld [vmem:[#allocation2 + $0x788] sm:$0xff]
    %v282 = vld [vmem:[#allocation2 + $0x790] sm:$0xff]
    %v283 = vld [vmem:[#allocation2 + $0x798] sm:$0xff]
    %v284 = vld [vmem:[#allocation2 + $0x7a0] sm:$0xff]
    %v285 = vld [vmem:[#allocation2 + $0x7a8] sm:$0xff]
    %v286 = vld [vmem:[#allocation2 + $0x7b0] sm:$0xff]
    %v287 = vld [vmem:[#allocation2 + $0x7b8] sm:$0xff]
    %v288 = vld [vmem:[#allocation2 + $0x7c0] sm:$0xff]
    %v289 = vld [vmem:[#allocation2 + $0x7c8] sm:$0xff]
    %v290 = vld [vmem:[#allocation2 + $0x7d0] sm:$0xff]
    %v291 = vld [vmem:[#allocation2 + $0x7d8] sm:$0xff]
    %v292 = vld [vmem:[#allocation2 + $0x7e0] sm:$0xff]
    %v293 = vld [vmem:[#allocation2 + $0x7e8] sm:$0xff]
    %v294 = vld [vmem:[#allocation2 + $0x7f0] sm:$0xff]
    %v295 = vld [vmem:[#allocation2 + $0x7f8] sm:$0xff]
    %v296 = vld [vmem:[#allocation5] sm:$0xff]
    %v297 = vld [vmem:[#allocation5 + $0x8] sm:$0xff]
    %v298 = vld [vmem:[#allocation5 + $0x10] sm:$0xff]
    %v299 = vld [vmem:[#allocation5 + $0x18] sm:$0xff]
    %v300 = vld [vmem:[#allocation5 + $0x20] sm:$0xff]
    %v301 = vld [vmem:[#allocation5 + $0x28] sm:$0xff]
    %v302 = vld [vmem:[#allocation5 + $0x30] sm:$0xff]
    %v303 = vld [vmem:[#allocation5 + $0x38] sm:$0xff]
    %v304 = vld [vmem:[#allocation5 + $0x40] sm:$0xff]
    %v305 = vld [vmem:[#allocation5 + $0x48] sm:$0xff]
    %v306 = vld [vmem:[#allocation5 + $0x50] sm:$0xff]
    %v307 = vld [vmem:[#allocation5 + $0x58] sm:$0xff]
    %v308 = vld [vmem:[#allocation5 + $0x60] sm:$0xff]
    %v309 = vld [vmem:[#allocation5 + $0x68] sm:$0xff]
    %v310 = vld [vmem:[#allocation5 + $0x70] sm:$0xff]
    %v311 = vld [vmem:[#allocation5 + $0x78] sm:$0xff]
    %v312 = vld [vmem:[#allocation5 + $0x80] sm:$0xff]
    %v313 = vld [vmem:[#allocation5 + $0x88] sm:$0xff]
    %v314 = vld [vmem:[#allocation5 + $0x90] sm:$0xff]
    %v315 = vld [vmem:[#allocation5 + $0x98] sm:$0xff]
    %v316 = vld [vmem:[#allocation5 + $0xa0] sm:$0xff]
    %v317 = vld [vmem:[#allocation5 + $0xa8] sm:$0xff]
    %v318 = vld [vmem:[#allocation5 + $0xb0] sm:$0xff]
    %v319 = vld [vmem:[#allocation5 + $0xb8] sm:$0xff]
    %v320 = vld [vmem:[#allocation5 + $0xc0] sm:$0xff]
    %v321 = vld [vmem:[#allocation5 + $0xc8] sm:$0xff]
    %v322 = vld [vmem:[#allocation5 + $0xd0] sm:$0xff]
    %v323 = vld [vmem:[#allocation5 + $0xd8] sm:$0xff]
    %v324 = vld [vmem:[#allocation5 + $0xe0] sm:$0xff]
    %v325 = vld [vmem:[#allocation5 + $0xe8] sm:$0xff]
    %v326 = vld [vmem:[#allocation5 + $0xf0] sm:$0xff]
    %v327 = vld [vmem:[#allocation5 + $0xf8] sm:$0xff]
    %v328 = vld [vmem:[#allocation5 + $0x100] sm:$0xff]
    %v329 = vld [vmem:[#allocation5 + $0x108] sm:$0xff]
    %v330 = vld [vmem:[#allocation5 + $0x110] sm:$0xff]
    %v331 = vld [vmem:[#allocation5 + $0x118] sm:$0xff]
    %v332 = vld [vmem:[#allocation5 + $0x120] sm:$0xff]
    %v333 = vld [vmem:[#allocation5 + $0x128] sm:$0xff]
    %v334 = vld [vmem:[#allocation5 + $0x130] sm:$0xff]
    %v335 = vld [vmem:[#allocation5 + $0x138] sm:$0xff]
    %v336 = vld [vmem:[#allocation5 + $0x140] sm:$0xff]
    %v337 = vld [vmem:[#allocation5 + $0x148] sm:$0xff]
    %v338 = vld [vmem:[#allocation5 + $0x150] sm:$0xff]
    %v339 = vld [vmem:[#allocation5 + $0x158] sm:$0xff]
    %v340 = vld [vmem:[#allocation5 + $0x160] sm:$0xff]
    %v341 = vld [vmem:[#allocation5 + $0x168] sm:$0xff]
    %v342 = vld [vmem:[#allocation5 + $0x170] sm:$0xff]
    %v343 = vld [vmem:[#allocation5 + $0x178] sm:$0xff]
    %v344 = vld [vmem:[#allocation5 + $0x180] sm:$0xff]
    %v345 = vld [vmem:[#allocation5 + $0x188] sm:$0xff]
    %v346 = vld [vmem:[#allocation5 + $0x190] sm:$0xff]
    %v347 = vld [vmem:[#allocation5 + $0x198] sm:$0xff]
    %v348 = vld [vmem:[#allocation5 + $0x1a0] sm:$0xff]
    %v349 = vld [vmem:[#allocation5 + $0x1a8] sm:$0xff]
    %v350 = vld [vmem:[#allocation5 + $0x1b0] sm:$0xff]
    %v351 = vld [vmem:[#allocation5 + $0x1b8] sm:$0xff]
    %v352 = vld [vmem:[#allocation5 + $0x1c0] sm:$0xff]
    %v353 = vld [vmem:[#allocation5 + $0x1c8] sm:$0xff]
    %v354 = vld [vmem:[#allocation5 + $0x1d0] sm:$0xff]
    %v355 = vld [vmem:[#allocation5 + $0x1d8] sm:$0xff]
    %v356 = vld [vmem:[#allocation5 + $0x1e0] sm:$0xff]
    %v357 = vld [vmem:[#allocation5 + $0x1e8] sm:$0xff]
    %v358 = vld [vmem:[#allocation5 + $0x1f0] sm:$0xff]
    %v359 = vld [vmem:[#allocation5 + $0x1f8] sm:$0xff]
    %v360 = vld [vmem:[#allocation5 + $0x200] sm:$0xff]
    %v361 = vld [vmem:[#allocation5 + $0x208] sm:$0xff]
    %v362 = vld [vmem:[#allocation5 + $0x210] sm:$0xff]
    %v363 = vld [vmem:[#allocation5 + $0x218] sm:$0xff]
    %v364 = vld [vmem:[#allocation5 + $0x220] sm:$0xff]
    %v365 = vld [vmem:[#allocation5 + $0x228] sm:$0xff]
    %v366 = vld [vmem:[#allocation5 + $0x230] sm:$0xff]
    %v367 = vld [vmem:[#allocation5 + $0x238] sm:$0xff]
    %v368 = vld [vmem:[#allocation5 + $0x240] sm:$0xff]
    %v369 = vld [vmem:[#allocation5 + $0x248] sm:$0xff]
    %v370 = vld [vmem:[#allocation5 + $0x250] sm:$0xff]
    %v371 = vld [vmem:[#allocation5 + $0x258] sm:$0xff]
    %v372 = vld [vmem:[#allocation5 + $0x260] sm:$0xff]
    %v373 = vld [vmem:[#allocation5 + $0x268] sm:$0xff]
    %v374 = vld [vmem:[#allocation5 + $0x270] sm:$0xff]
    %v375 = vld [vmem:[#allocation5 + $0x278] sm:$0xff]
    %v376 = vld [vmem:[#allocation5 + $0x280] sm:$0xff]
    %v377 = vld [vmem:[#allocation5 + $0x288] sm:$0xff]
    %v378 = vld [vmem:[#allocation5 + $0x290] sm:$0xff]
    %v379 = vld [vmem:[#allocation5 + $0x298] sm:$0xff]
    %v380 = vld [vmem:[#allocation5 + $0x2a0] sm:$0xff]
    %v381 = vld [vmem:[#allocation5 + $0x2a8] sm:$0xff]
    %v382 = vld [vmem:[#allocation5 + $0x2b0] sm:$0xff]
    %v383 = vld [vmem:[#allocation5 + $0x2b8] sm:$0xff]
    %v384 = vld [vmem:[#allocation5 + $0x2c0] sm:$0xff]
    %v385 = vld [vmem:[#allocation5 + $0x2c8] sm:$0xff]
    %v386 = vld [vmem:[#allocation5 + $0x2d0] sm:$0xff]
    %v387 = vld [vmem:[#allocation5 + $0x2d8] sm:$0xff]
    %v388 = vld [vmem:[#allocation5 + $0x2e0] sm:$0xff]
    %v389 = vld [vmem:[#allocation5 + $0x2e8] sm:$0xff]
    %v390 = vld [vmem:[#allocation5 + $0x2f0] sm:$0xff]
    %v391 = vld [vmem:[#allocation5 + $0x2f8] sm:$0xff]
    %v392 = vld [vmem:[#allocation5 + $0x300] sm:$0xff]
    %v393 = vld [vmem:[#allocation5 + $0x308] sm:$0xff]
    %v394 = vld [vmem:[#allocation5 + $0x310] sm:$0xff]
    %v395 = vld [vmem:[#allocation5 + $0x318] sm:$0xff]
    %v396 = vld [vmem:[#allocation5 + $0x320] sm:$0xff]
    %v397 = vld [vmem:[#allocation5 + $0x328] sm:$0xff]
    %v398 = vld [vmem:[#allocation5 + $0x330] sm:$0xff]
    %v399 = vld [vmem:[#allocation5 + $0x338] sm:$0xff]
    %v400 = vld [vmem:[#allocation5 + $0x340] sm:$0xff]
    %v401 = vld [vmem:[#allocation5 + $0x348] sm:$0xff]
    %v402 = vld [vmem:[#allocation5 + $0x350] sm:$0xff]
    %v403 = vld [vmem:[#allocation5 + $0x358] sm:$0xff]
    %v404 = vld [vmem:[#allocation5 + $0x360] sm:$0xff]
    %v405 = vld [vmem:[#allocation5 + $0x368] sm:$0xff]
    %v406 = vld [vmem:[#allocation5 + $0x370] sm:$0xff]
    %v407 = vld [vmem:[#allocation5 + $0x378] sm:$0xff]
    %v408 = vld [vmem:[#allocation5 + $0x380] sm:$0xff]
    %v409 = vld [vmem:[#allocation5 + $0x388] sm:$0xff]
    %v410 = vld [vmem:[#allocation5 + $0x390] sm:$0xff]
    %v411 = vld [vmem:[#allocation5 + $0x398] sm:$0xff]
    %v412 = vld [vmem:[#allocation5 + $0x3a0] sm:$0xff]
    %v413 = vld [vmem:[#allocation5 + $0x3a8] sm:$0xff]
    %v414 = vld [vmem:[#allocation5 + $0x3b0] sm:$0xff]
    %v415 = vld [vmem:[#allocation5 + $0x3b8] sm:$0xff]
    %v416 = vld [vmem:[#allocation5 + $0x3c0] sm:$0xff]
    %v417 = vld [vmem:[#allocation5 + $0x3c8] sm:$0xff]
    %v418 = vld [vmem:[#allocation5 + $0x3d0] sm:$0xff]
    %v419 = vld [vmem:[#allocation5 + $0x3d8] sm:$0xff]
    %v420 = vld [vmem:[#allocation5 + $0x3e0] sm:$0xff]
    %v421 = vld [vmem:[#allocation5 + $0x3e8] sm:$0xff]
    %v422 = vld [vmem:[#allocation5 + $0x3f0] sm:$0xff]
    %v423 = vld [vmem:[#allocation5 + $0x3f8] sm:$0xff]
    %v424 = vld [vmem:[#allocation5 + $0x400] sm:$0xff]
    %v425 = vld [vmem:[#allocation5 + $0x408] sm:$0xff]
    %v426 = vld [vmem:[#allocation5 + $0x410] sm:$0xff]
    %v427 = vld [vmem:[#allocation5 + $0x418] sm:$0xff]
    %v428 = vld [vmem:[#allocation5 + $0x420] sm:$0xff]
    %v429 = vld [vmem:[#allocation5 + $0x428] sm:$0xff]
    %v430 = vld [vmem:[#allocation5 + $0x430] sm:$0xff]
    %v431 = vld [vmem:[#allocation5 + $0x438] sm:$0xff]
    %v432 = vld [vmem:[#allocation5 + $0x440] sm:$0xff]
    %v433 = vld [vmem:[#allocation5 + $0x448] sm:$0xff]
    %v434 = vld [vmem:[#allocation5 + $0x450] sm:$0xff]
    %v435 = vld [vmem:[#allocation5 + $0x458] sm:$0xff]
    %v436 = vld [vmem:[#allocation5 + $0x460] sm:$0xff]
    %v437 = vld [vmem:[#allocation5 + $0x468] sm:$0xff]
    %v438 = vld [vmem:[#allocation5 + $0x470] sm:$0xff]
    %v439 = vld [vmem:[#allocation5 + $0x478] sm:$0xff]
    %v440 = vld [vmem:[#allocation5 + $0x480] sm:$0xff]
    %v441 = vld [vmem:[#allocation5 + $0x488] sm:$0xff]
    %v442 = vld [vmem:[#allocation5 + $0x490] sm:$0xff]
    %v443 = vld [vmem:[#allocation5 + $0x498] sm:$0xff]
    %v444 = vld [vmem:[#allocation5 + $0x4a0] sm:$0xff]
    %v445 = vld [vmem:[#allocation5 + $0x4a8] sm:$0xff]
    %v446 = vld [vmem:[#allocation5 + $0x4b0] sm:$0xff]
    %v447 = vld [vmem:[#allocation5 + $0x4b8] sm:$0xff]
    %v448 = vld [vmem:[#allocation5 + $0x4c0] sm:$0xff]
    %v449 = vld [vmem:[#allocation5 + $0x4c8] sm:$0xff]
    %v450 = vld [vmem:[#allocation5 + $0x4d0] sm:$0xff]
    %v451 = vld [vmem:[#allocation5 + $0x4d8] sm:$0xff]
    %v452 = vld [vmem:[#allocation5 + $0x4e0] sm:$0xff]
    %v453 = vld [vmem:[#allocation5 + $0x4e8] sm:$0xff]
    %v454 = vld [vmem:[#allocation5 + $0x4f0] sm:$0xff]
    %v455 = vld [vmem:[#allocation5 + $0x4f8] sm:$0xff]
    %v456 = vld [vmem:[#allocation5 + $0x500] sm:$0xff]
    %v457 = vld [vmem:[#allocation5 + $0x508] sm:$0xff]
    %v458 = vld [vmem:[#allocation5 + $0x510] sm:$0xff]
    %v459 = vld [vmem:[#allocation5 + $0x518] sm:$0xff]
    %v460 = vld [vmem:[#allocation5 + $0x520] sm:$0xff]
    %v461 = vld [vmem:[#allocation5 + $0x528] sm:$0xff]
    %v462 = vld [vmem:[#allocation5 + $0x530] sm:$0xff]
    %v463 = vld [vmem:[#allocation5 + $0x538] sm:$0xff]
    %v464 = vld [vmem:[#allocation5 + $0x540] sm:$0xff]
    %v465 = vld [vmem:[#allocation5 + $0x548] sm:$0xff]
    %v466 = vld [vmem:[#allocation5 + $0x550] sm:$0xff]
    %v467 = vld [vmem:[#allocation5 + $0x558] sm:$0xff]
    %v468 = vld [vmem:[#allocation5 + $0x560] sm:$0xff]
    %v469 = vld [vmem:[#allocation5 + $0x568] sm:$0xff]
    %v470 = vld [vmem:[#allocation5 + $0x570] sm:$0xff]
    %v471 = vld [vmem:[#allocation5 + $0x578] sm:$0xff]
    %v472 = vld [vmem:[#allocation5 + $0x580] sm:$0xff]
    %v473 = vld [vmem:[#allocation5 + $0x588] sm:$0xff]
    %v474 = vld [vmem:[#allocation5 + $0x590] sm:$0xff]
    %v475 = vld [vmem:[#allocation5 + $0x598] sm:$0xff]
    %v476 = vld [vmem:[#allocation5 + $0x5a0] sm:$0xff]
    %v477 = vld [vmem:[#allocation5 + $0x5a8] sm:$0xff]
    %v478 = vld [vmem:[#allocation5 + $0x5b0] sm:$0xff]
    %v479 = vld [vmem:[#allocation5 + $0x5b8] sm:$0xff]
    %v480 = vld [vmem:[#allocation5 + $0x5c0] sm:$0xff]
    %v481 = vld [vmem:[#allocation5 + $0x5c8] sm:$0xff]
    %v482 = vld [vmem:[#allocation5 + $0x5d0] sm:$0xff]
    %v483 = vld [vmem:[#allocation5 + $0x5d8] sm:$0xff]
    %v484 = vld [vmem:[#allocation5 + $0x5e0] sm:$0xff]
    %v485 = vld [vmem:[#allocation5 + $0x5e8] sm:$0xff]
    %v486 = vld [vmem:[#allocation5 + $0x5f0] sm:$0xff]
    %v487 = vld [vmem:[#allocation5 + $0x5f8] sm:$0xff]
    %v488 = vld [vmem:[#allocation5 + $0x600] sm:$0xff]
    %v489 = vld [vmem:[#allocation5 + $0x608] sm:$0xff]
    %v490 = vld [vmem:[#allocation5 + $0x610] sm:$0xff]
    %v491 = vld [vmem:[#allocation5 + $0x618] sm:$0xff]
    %v492 = vld [vmem:[#allocation5 + $0x620] sm:$0xff]
    %v493 = vld [vmem:[#allocation5 + $0x628] sm:$0xff]
    %v494 = vld [vmem:[#allocation5 + $0x630] sm:$0xff]
    %v495 = vld [vmem:[#allocation5 + $0x638] sm:$0xff]
    %v496 = vld [vmem:[#allocation5 + $0x640] sm:$0xff]
    %v497 = vld [vmem:[#allocation5 + $0x648] sm:$0xff]
    %v498 = vld [vmem:[#allocation5 + $0x650] sm:$0xff]
    %v499 = vld [vmem:[#allocation5 + $0x658] sm:$0xff]
    %v500 = vld [vmem:[#allocation5 + $0x660] sm:$0xff]
    %v501 = vld [vmem:[#allocation5 + $0x668] sm:$0xff]
    %v502 = vld [vmem:[#allocation5 + $0x670] sm:$0xff]
    %v503 = vld [vmem:[#allocation5 + $0x678] sm:$0xff]
    %v504 = vld [vmem:[#allocation5 + $0x680] sm:$0xff]
    %v505 = vld [vmem:[#allocation5 + $0x688] sm:$0xff]
    %v506 = vld [vmem:[#allocation5 + $0x690] sm:$0xff]
    %v507 = vld [vmem:[#allocation5 + $0x698] sm:$0xff]
    %v508 = vld [vmem:[#allocation5 + $0x6a0] sm:$0xff]
    %v509 = vld [vmem:[#allocation5 + $0x6a8] sm:$0xff]
    %v510 = vld [vmem:[#allocation5 + $0x6b0] sm:$0xff]
    %v511 = vld [vmem:[#allocation5 + $0x6b8] sm:$0xff]
    %v512 = vld [vmem:[#allocation5 + $0x6c0] sm:$0xff]
    %v513 = vld [vmem:[#allocation5 + $0x6c8] sm:$0xff]
    %v514 = vld [vmem:[#allocation5 + $0x6d0] sm:$0xff]
    %v515 = vld [vmem:[#allocation5 + $0x6d8] sm:$0xff]
    %v516 = vld [vmem:[#allocation5 + $0x6e0] sm:$0xff]
    %v517 = vld [vmem:[#allocation5 + $0x6e8] sm:$0xff]
    %v518 = vld [vmem:[#allocation5 + $0x6f0] sm:$0xff]
    %v519 = vld [vmem:[#allocation5 + $0x6f8] sm:$0xff]
    %v520 = vld [vmem:[#allocation5 + $0x700] sm:$0xff]
    %v521 = vld [vmem:[#allocation5 + $0x708] sm:$0xff]
    %v522 = vld [vmem:[#allocation5 + $0x710] sm:$0xff]
    %v523 = vld [vmem:[#allocation5 + $0x718] sm:$0xff]
    %v524 = vld [vmem:[#allocation5 + $0x720] sm:$0xff]
    %v525 = vld [vmem:[#allocation5 + $0x728] sm:$0xff]
    %v526 = vld [vmem:[#allocation5 + $0x730] sm:$0xff]
    %v527 = vld [vmem:[#allocation5 + $0x738] sm:$0xff]
    %v528 = vld [vmem:[#allocation5 + $0x740] sm:$0xff]
    %v529 = vld [vmem:[#allocation5 + $0x748] sm:$0xff]
    %v530 = vld [vmem:[#allocation5 + $0x750] sm:$0xff]
    %v531 = vld [vmem:[#allocation5 + $0x758] sm:$0xff]
    %v532 = vld [vmem:[#allocation5 + $0x760] sm:$0xff]
    %v533 = vld [vmem:[#allocation5 + $0x768] sm:$0xff]
    %v534 = vld [vmem:[#allocation5 + $0x770] sm:$0xff]
    %v535 = vld [vmem:[#allocation5 + $0x778] sm:$0xff]
    %v536 = vld [vmem:[#allocation5 + $0x780] sm:$0xff]
    %v537 = vld [vmem:[#allocation5 + $0x788] sm:$0xff]
    %v538 = vld [vmem:[#allocation5 + $0x790] sm:$0xff]
    %v539 = vld [vmem:[#allocation5 + $0x798] sm:$0xff]
    %v540 = vld [vmem:[#allocation5 + $0x7a0] sm:$0xff]
    %v541 = vld [vmem:[#allocation5 + $0x7a8] sm:$0xff]
    %v542 = vld [vmem:[#allocation5 + $0x7b0] sm:$0xff]
    %v543 = vld [vmem:[#allocation5 + $0x7b8] sm:$0xff]
    %v544 = vld [vmem:[#allocation5 + $0x7c0] sm:$0xff]
    %v545 = vld [vmem:[#allocation5 + $0x7c8] sm:$0xff]
    %v546 = vld [vmem:[#allocation5 + $0x7d0] sm:$0xff]
    %v547 = vld [vmem:[#allocation5 + $0x7d8] sm:$0xff]
    %v548 = vld [vmem:[#allocation5 + $0x7e0] sm:$0xff]
    %v549 = vld [vmem:[#allocation5 + $0x7e8] sm:$0xff]
    %v550 = vld [vmem:[#allocation5 + $0x7f0] sm:$0xff]
    %v551 = vld [vmem:[#allocation5 + $0x7f8] sm:$0xff]
    %v552 = vmul.f32 %v40, %v296
    %v553 = vmul.f32 %v41, %v297
    %v554 = vmul.f32 %v42, %v298
    %v555 = vmul.f32 %v43, %v299
    %v556 = vmul.f32 %v44, %v300
    %v557 = vmul.f32 %v45, %v301
    %v558 = vmul.f32 %v46, %v302
    %v559 = vmul.f32 %v47, %v303
    %v560 = vmul.f32 %v48, %v304
    %v561 = vmul.f32 %v49, %v305
    %v562 = vmul.f32 %v50, %v306
    %v563 = vmul.f32 %v51, %v307
    %v564 = vmul.f32 %v52, %v308
    %v565 = vmul.f32 %v53, %v309
    %v566 = vmul.f32 %v54, %v310
    %v567 = vmul.f32 %v55, %v311
    %v568 = vmul.f32 %v56, %v312
    %v569 = vmul.f32 %v57, %v313
    %v570 = vmul.f32 %v58, %v314
    %v571 = vmul.f32 %v59, %v315
    %v572 = vmul.f32 %v60, %v316
    %v573 = vmul.f32 %v61, %v317
    %v574 = vmul.f32 %v62, %v318
    %v575 = vmul.f32 %v63, %v319
    %v576 = vmul.f32 %v64, %v320
    %v577 = vmul.f32 %v65, %v321
    %v578 = vmul.f32 %v66, %v322
    %v579 = vmul.f32 %v67, %v323
    %v580 = vmul.f32 %v68, %v324
    %v581 = vmul.f32 %v69, %v325
    %v582 = vmul.f32 %v70, %v326
    %v583 = vmul.f32 %v71, %v327
    %v584 = vmul.f32 %v72, %v328
    %v585 = vmul.f32 %v73, %v329
    %v586 = vmul.f32 %v74, %v330
    %v587 = vmul.f32 %v75, %v331
    %v588 = vmul.f32 %v76, %v332
    %v589 = vmul.f32 %v77, %v333
    %v590 = vmul.f32 %v78, %v334
    %v591 = vmul.f32 %v79, %v335
    %v592 = vmul.f32 %v80, %v336
    %v593 = vmul.f32 %v81, %v337
    %v594 = vmul.f32 %v82, %v338
    %v595 = vmul.f32 %v83, %v339
    %v596 = vmul.f32 %v84, %v340
    %v597 = vmul.f32 %v85, %v341
    %v598 = vmul.f32 %v86, %v342
    %v599 = vmul.f32 %v87, %v343
    %v600 = vmul.f32 %v88, %v344
    %v601 = vmul.f32 %v89, %v345
    %v602 = vmul.f32 %v90, %v346
    %v603 = vmul.f32 %v91, %v347
    %v604 = vmul.f32 %v92, %v348
    %v605 = vmul.f32 %v93, %v349
    %v606 = vmul.f32 %v94, %v350
    %v607 = vmul.f32 %v95, %v351
    %v608 = vmul.f32 %v96, %v352
    %v609 = vmul.f32 %v97, %v353
    %v610 = vmul.f32 %v98, %v354
    %v611 = vmul.f32 %v99, %v355
    %v612 = vmul.f32 %v100, %v356
    %v613 = vmul.f32 %v101, %v357
    %v614 = vmul.f32 %v102, %v358
    %v615 = vmul.f32 %v103, %v359
    %v616 = vmul.f32 %v104, %v360
    %v617 = vmul.f32 %v105, %v361
    %v618 = vmul.f32 %v106, %v362
    %v619 = vmul.f32 %v107, %v363
    %v620 = vmul.f32 %v108, %v364
    %v621 = vmul.f32 %v109, %v365
    %v622 = vmul.f32 %v110, %v366
    %v623 = vmul.f32 %v111, %v367
    %v624 = vmul.f32 %v112, %v368
    %v625 = vmul.f32 %v113, %v369
    %v626 = vmul.f32 %v114, %v370
    %v627 = vmul.f32 %v115, %v371
    %v628 = vmul.f32 %v116, %v372
    %v629 = vmul.f32 %v117, %v373
    %v630 = vmul.f32 %v118, %v374
    %v631 = vmul.f32 %v119, %v375
    %v632 = vmul.f32 %v120, %v376
    %v633 = vmul.f32 %v121, %v377
    %v634 = vmul.f32 %v122, %v378
    %v635 = vmul.f32 %v123, %v379
    %v636 = vmul.f32 %v124, %v380
    %v637 = vmul.f32 %v125, %v381
    %v638 = vmul.f32 %v126, %v382
    %v639 = vmul.f32 %v127, %v383
    %v640 = vmul.f32 %v128, %v384
    %v641 = vmul.f32 %v129, %v385
    %v642 = vmul.f32 %v130, %v386
    %v643 = vmul.f32 %v131, %v387
    %v644 = vmul.f32 %v132, %v388
    %v645 = vmul.f32 %v133, %v389
    %v646 = vmul.f32 %v134, %v390
    %v647 = vmul.f32 %v135, %v391
    %v648 = vmul.f32 %v136, %v392
    %v649 = vmul.f32 %v137, %v393
    %v650 = vmul.f32 %v138, %v394
    %v651 = vmul.f32 %v139, %v395
    %v652 = vmul.f32 %v140, %v396
    %v653 = vmul.f32 %v141, %v397
    %v654 = vmul.f32 %v142, %v398
    %v655 = vmul.f32 %v143, %v399
    %v656 = vmul.f32 %v144, %v400
    %v657 = vmul.f32 %v145, %v401
    %v658 = vmul.f32 %v146, %v402
    %v659 = vmul.f32 %v147, %v403
    %v660 = vmul.f32 %v148, %v404
    %v661 = vmul.f32 %v149, %v405
    %v662 = vmul.f32 %v150, %v406
    %v663 = vmul.f32 %v151, %v407
    %v664 = vmul.f32 %v152, %v408
    %v665 = vmul.f32 %v153, %v409
    %v666 = vmul.f32 %v154, %v410
    %v667 = vmul.f32 %v155, %v411
    %v668 = vmul.f32 %v156, %v412
    %v669 = vmul.f32 %v157, %v413
    %v670 = vmul.f32 %v158, %v414
    %v671 = vmul.f32 %v159, %v415
    %v672 = vmul.f32 %v160, %v416
    %v673 = vmul.f32 %v161, %v417
    %v674 = vmul.f32 %v162, %v418
    %v675 = vmul.f32 %v163, %v419
    %v676 = vmul.f32 %v164, %v420
    %v677 = vmul.f32 %v165, %v421
    %v678 = vmul.f32 %v166, %v422
    %v679 = vmul.f32 %v167, %v423
    %v680 = vmul.f32 %v168, %v424
    %v681 = vmul.f32 %v169, %v425
    %v682 = vmul.f32 %v170, %v426
    %v683 = vmul.f32 %v171, %v427
    %v684 = vmul.f32 %v172, %v428
    %v685 = vmul.f32 %v173, %v429
    %v686 = vmul.f32 %v174, %v430
    %v687 = vmul.f32 %v175, %v431
    %v688 = vmul.f32 %v176, %v432
    %v689 = vmul.f32 %v177, %v433
    %v690 = vmul.f32 %v178, %v434
    %v691 = vmul.f32 %v179, %v435
    %v692 = vmul.f32 %v180, %v436
    %v693 = vmul.f32 %v181, %v437
    %v694 = vmul.f32 %v182, %v438
    %v695 = vmul.f32 %v183, %v439
    %v696 = vmul.f32 %v184, %v440
    %v697 = vmul.f32 %v185, %v441
    %v698 = vmul.f32 %v186, %v442
    %v699 = vmul.f32 %v187, %v443
    %v700 = vmul.f32 %v188, %v444
    %v701 = vmul.f32 %v189, %v445
    %v702 = vmul.f32 %v190, %v446
    %v703 = vmul.f32 %v191, %v447
    %v704 = vmul.f32 %v192, %v448
    %v705 = vmul.f32 %v193, %v449
    %v706 = vmul.f32 %v194, %v450
    %v707 = vmul.f32 %v195, %v451
    %v708 = vmul.f32 %v196, %v452
    %v709 = vmul.f32 %v197, %v453
    %v710 = vmul.f32 %v198, %v454
    %v711 = vmul.f32 %v199, %v455
    %v712 = vmul.f32 %v200, %v456
    %v713 = vmul.f32 %v201, %v457
    %v714 = vmul.f32 %v202, %v458
    %v715 = vmul.f32 %v203, %v459
    %v716 = vmul.f32 %v204, %v460
    %v717 = vmul.f32 %v205, %v461
    %v718 = vmul.f32 %v206, %v462
    %v719 = vmul.f32 %v207, %v463
    %v720 = vmul.f32 %v208, %v464
    %v721 = vmul.f32 %v209, %v465
    %v722 = vmul.f32 %v210, %v466
    %v723 = vmul.f32 %v211, %v467
    %v724 = vmul.f32 %v212, %v468
    %v725 = vmul.f32 %v213, %v469
    %v726 = vmul.f32 %v214, %v470
    %v727 = vmul.f32 %v215, %v471
    %v728 = vmul.f32 %v216, %v472
    %v729 = vmul.f32 %v217, %v473
    %v730 = vmul.f32 %v218, %v474
    %v731 = vmul.f32 %v219, %v475
    %v732 = vmul.f32 %v220, %v476
    %v733 = vmul.f32 %v221, %v477
    %v734 = vmul.f32 %v222, %v478
    %v735 = vmul.f32 %v223, %v479
    %v736 = vmul.f32 %v224, %v480
    %v737 = vmul.f32 %v225, %v481
    %v738 = vmul.f32 %v226, %v482
    %v739 = vmul.f32 %v227, %v483
    %v740 = vmul.f32 %v228, %v484
    %v741 = vmul.f32 %v229, %v485
    %v742 = vmul.f32 %v230, %v486
    %v743 = vmul.f32 %v231, %v487
    %v744 = vmul.f32 %v232, %v488
    %v745 = vmul.f32 %v233, %v489
    %v746 = vmul.f32 %v234, %v490
    %v747 = vmul.f32 %v235, %v491
    %v748 = vmul.f32 %v236, %v492
    %v749 = vmul.f32 %v237, %v493
    %v750 = vmul.f32 %v238, %v494
    %v751 = vmul.f32 %v239, %v495
    %v752 = vmul.f32 %v240, %v496
    %v753 = vmul.f32 %v241, %v497
    %v754 = vmul.f32 %v242, %v498
    %v755 = vmul.f32 %v243, %v499
    %v756 = vmul.f32 %v244, %v500
    %v757 = vmul.f32 %v245, %v501
    %v758 = vmul.f32 %v246, %v502
    %v759 = vmul.f32 %v247, %v503
    %v760 = vmul.f32 %v248, %v504
    %v761 = vmul.f32 %v249, %v505
    %v762 = vmul.f32 %v250, %v506
    %v763 = vmul.f32 %v251, %v507
    %v764 = vmul.f32 %v252, %v508
    %v765 = vmul.f32 %v253, %v509
    %v766 = vmul.f32 %v254, %v510
    %v767 = vmul.f32 %v255, %v511
    %v768 = vmul.f32 %v256, %v512
    %v769 = vmul.f32 %v257, %v513
    %v770 = vmul.f32 %v258, %v514
    %v771 = vmul.f32 %v259, %v515
    %v772 = vmul.f32 %v260, %v516
    %v773 = vmul.f32 %v261, %v517
    %v774 = vmul.f32 %v262, %v518
    %v775 = vmul.f32 %v263, %v519
    %v776 = vmul.f32 %v264, %v520
    %v777 = vmul.f32 %v265, %v521
    %v778 = vmul.f32 %v266, %v522
    %v779 = vmul.f32 %v267, %v523
    %v780 = vmul.f32 %v268, %v524
    %v781 = vmul.f32 %v269, %v525
    %v782 = vmul.f32 %v270, %v526
    %v783 = vmul.f32 %v271, %v527
    %v784 = vmul.f32 %v272, %v528
    %v785 = vmul.f32 %v273, %v529
    %v786 = vmul.f32 %v274, %v530
    %v787 = vmul.f32 %v275, %v531
    %v788 = vmul.f32 %v276, %v532
    %v789 = vmul.f32 %v277, %v533
    %v790 = vmul.f32 %v278, %v534
    %v791 = vmul.f32 %v279, %v535
    %v792 = vmul.f32 %v280, %v536
    %v793 = vmul.f32 %v281, %v537
    %v794 = vmul.f32 %v282, %v538
    %v795 = vmul.f32 %v283, %v539
    %v796 = vmul.f32 %v284, %v540
    %v797 = vmul.f32 %v285, %v541
    %v798 = vmul.f32 %v286, %v542
    %v799 = vmul.f32 %v287, %v543
    %v800 = vmul.f32 %v288, %v544
    %v801 = vmul.f32 %v289, %v545
    %v802 = vmul.f32 %v290, %v546
    %v803 = vmul.f32 %v291, %v547
    %v804 = vmul.f32 %v292, %v548
    %v805 = vmul.f32 %v293, %v549
    %v806 = vmul.f32 %v294, %v550
    %v807 = vmul.f32 %v295, %v551
    %v808 = vsub.f32 1.0, %v552
    %v809 = vsub.f32 1.0, %v553
    %v810 = vsub.f32 1.0, %v554
    %v811 = vsub.f32 1.0, %v555
    %v812 = vsub.f32 1.0, %v556
    %v813 = vsub.f32 1.0, %v557
    %v814 = vsub.f32 1.0, %v558
    %v815 = vsub.f32 1.0, %v559
    %v816 = vsub.f32 1.0, %v560
    %v817 = vsub.f32 1.0, %v561
    %v818 = vsub.f32 1.0, %v562
    %v819 = vsub.f32 1.0, %v563
    %v820 = vsub.f32 1.0, %v564
    %v821 = vsub.f32 1.0, %v565
    %v822 = vsub.f32 1.0, %v566
    %v823 = vsub.f32 1.0, %v567
    %v824 = vsub.f32 1.0, %v568
    %v825 = vsub.f32 1.0, %v569
    %v826 = vsub.f32 1.0, %v570
    %v827 = vsub.f32 1.0, %v571
    %v828 = vsub.f32 1.0, %v572
    %v829 = vsub.f32 1.0, %v573
    %v830 = vsub.f32 1.0, %v574
    %v831 = vsub.f32 1.0, %v575
    %v832 = vsub.f32 1.0, %v576
    %v833 = vsub.f32 1.0, %v577
    %v834 = vsub.f32 1.0, %v578
    %v835 = vsub.f32 1.0, %v579
    %v836 = vsub.f32 1.0, %v580
    %v837 = vsub.f32 1.0, %v581
    %v838 = vsub.f32 1.0, %v582
    %v839 = vsub.f32 1.0, %v583
    %v840 = vsub.f32 1.0, %v584
    %v841 = vsub.f32 1.0, %v585
    %v842 = vsub.f32 1.0, %v586
    %v843 = vsub.f32 1.0, %v587
    %v844 = vsub.f32 1.0, %v588
    %v845 = vsub.f32 1.0, %v589
    %v846 = vsub.f32 1.0, %v590
    %v847 = vsub.f32 1.0, %v591
    %v848 = vsub.f32 1.0, %v592
    %v849 = vsub.f32 1.0, %v593
    %v850 = vsub.f32 1.0, %v594
    %v851 = vsub.f32 1.0, %v595
    %v852 = vsub.f32 1.0, %v596
    %v853 = vsub.f32 1.0, %v597
    %v854 = vsub.f32 1.0, %v598
    %v855 = vsub.f32 1.0, %v599
    %v856 = vsub.f32 1.0, %v600
    %v857 = vsub.f32 1.0, %v601
    %v858 = vsub.f32 1.0, %v602
    %v859 = vsub.f32 1.0, %v603
    %v860 = vsub.f32 1.0, %v604
    %v861 = vsub.f32 1.0, %v605
    %v862 = vsub.f32 1.0, %v606
    %v863 = vsub.f32 1.0, %v607
    %v864 = vsub.f32 1.0, %v608
    %v865 = vsub.f32 1.0, %v609
    %v866 = vsub.f32 1.0, %v610
    %v867 = vsub.f32 1.0, %v611
    %v868 = vsub.f32 1.0, %v612
    %v869 = vsub.f32 1.0, %v613
    %v870 = vsub.f32 1.0, %v614
    %v871 = vsub.f32 1.0, %v615
    %v872 = vsub.f32 1.0, %v616
    %v873 = vsub.f32 1.0, %v617
    %v874 = vsub.f32 1.0, %v618
    %v875 = vsub.f32 1.0, %v619
    %v876 = vsub.f32 1.0, %v620
    %v877 = vsub.f32 1.0, %v621
    %v878 = vsub.f32 1.0, %v622
    %v879 = vsub.f32 1.0, %v623
    %v880 = vsub.f32 1.0, %v624
    %v881 = vsub.f32 1.0, %v625
    %v882 = vsub.f32 1.0, %v626
    %v883 = vsub.f32 1.0, %v627
    %v884 = vsub.f32 1.0, %v628
    %v885 = vsub.f32 1.0, %v629
    %v886 = vsub.f32 1.0, %v630
    %v887 = vsub.f32 1.0, %v631
    %v888 = vsub.f32 1.0, %v632
    %v889 = vsub.f32 1.0, %v633
    %v890 = vsub.f32 1.0, %v634
    %v891 = vsub.f32 1.0, %v635
    %v892 = vsub.f32 1.0, %v636
    %v893 = vsub.f32 1.0, %v637
    %v894 = vsub.f32 1.0, %v638
    %v895 = vsub.f32 1.0, %v639
    %v896 = vsub.f32 1.0, %v640
    %v897 = vsub.f32 1.0, %v641
    %v898 = vsub.f32 1.0, %v642
    %v899 = vsub.f32 1.0, %v643
    %v900 = vsub.f32 1.0, %v644
    %v901 = vsub.f32 1.0, %v645
    %v902 = vsub.f32 1.0, %v646
    %v903 = vsub.f32 1.0, %v647
    %v904 = vsub.f32 1.0, %v648
    %v905 = vsub.f32 1.0, %v649
    %v906 = vsub.f32 1.0, %v650
    %v907 = vsub.f32 1.0, %v651
    %v908 = vsub.f32 1.0, %v652
    %v909 = vsub.f32 1.0, %v653
    %v910 = vsub.f32 1.0, %v654
    %v911 = vsub.f32 1.0, %v655
    %v912 = vsub.f32 1.0, %v656
    %v913 = vsub.f32 1.0, %v657
    %v914 = vsub.f32 1.0, %v658
    %v915 = vsub.f32 1.0, %v659
    %v916 = vsub.f32 1.0, %v660
    %v917 = vsub.f32 1.0, %v661
    %v918 = vsub.f32 1.0, %v662
    %v919 = vsub.f32 1.0, %v663
    %v920 = vsub.f32 1.0, %v664
    %v921 = vsub.f32 1.0, %v665
    %v922 = vsub.f32 1.0, %v666
    %v923 = vsub.f32 1.0, %v667
    %v924 = vsub.f32 1.0, %v668
    %v925 = vsub.f32 1.0, %v669
    %v926 = vsub.f32 1.0, %v670
    %v927 = vsub.f32 1.0, %v671
    %v928 = vsub.f32 1.0, %v672
    %v929 = vsub.f32 1.0, %v673
    %v930 = vsub.f32 1.0, %v674
    %v931 = vsub.f32 1.0, %v675
    %v932 = vsub.f32 1.0, %v676
    %v933 = vsub.f32 1.0, %v677
    %v934 = vsub.f32 1.0, %v678
    %v935 = vsub.f32 1.0, %v679
    %v936 = vsub.f32 1.0, %v680
    %v937 = vsub.f32 1.0, %v681
    %v938 = vsub.f32 1.0, %v682
    %v939 = vsub.f32 1.0, %v683
    %v940 = vsub.f32 1.0, %v684
    %v941 = vsub.f32 1.0, %v685
    %v942 = vsub.f32 1.0, %v686
    %v943 = vsub.f32 1.0, %v687
    %v944 = vsub.f32 1.0, %v688
    %v945 = vsub.f32 1.0, %v689
    %v946 = vsub.f32 1.0, %v690
    %v947 = vsub.f32 1.0, %v691
    %v948 = vsub.f32 1.0, %v692
    %v949 = vsub.f32 1.0, %v693
    %v950 = vsub.f32 1.0, %v694
    %v951 = vsub.f32 1.0, %v695
    %v952 = vsub.f32 1.0, %v696
    %v953 = vsub.f32 1.0, %v697
    %v954 = vsub.f32 1.0, %v698
    %v955 = vsub.f32 1.0, %v699
    %v956 = vsub.f32 1.0, %v700
    %v957 = vsub.f32 1.0, %v701
    %v958 = vsub.f32 1.0, %v702
    %v959 = vsub.f32 1.0, %v703
    %v960 = vsub.f32 1.0, %v704
    %v961 = vsub.f32 1.0, %v705
    %v962 = vsub.f32 1.0, %v706
    %v963 = vsub.f32 1.0, %v707
    %v964 = vsub.f32 1.0, %v708
    %v965 = vsub.f32 1.0, %v709
    %v966 = vsub.f32 1.0, %v710
    %v967 = vsub.f32 1.0, %v711
    %v968 = vsub.f32 1.0, %v712
    %v969 = vsub.f32 1.0, %v713
    %v970 = vsub.f32 1.0, %v714
    %v971 = vsub.f32 1.0, %v715
    %v972 = vsub.f32 1.0, %v716
    %v973 = vsub.f32 1.0, %v717
    %v974 = vsub.f32 1.0, %v718
    %v975 = vsub.f32 1.0, %v719
    %v976 = vsub.f32 1.0, %v720
    %v977 = vsub.f32 1.0, %v721
    %v978 = vsub.f32 1.0, %v722
    %v979 = vsub.f32 1.0, %v723
    %v980 = vsub.f32 1.0, %v724
    %v981 = vsub.f32 1.0, %v725
    %v982 = vsub.f32 1.0, %v726
    %v983 = vsub.f32 1.0, %v727
    %v984 = vsub.f32 1.0, %v728
    %v985 = vsub.f32 1.0, %v729
    %v986 = vsub.f32 1.0, %v730
    %v987 = vsub.f32 1.0, %v731
    %v988 = vsub.f32 1.0, %v732
    %v989 = vsub.f32 1.0, %v733
    %v990 = vsub.f32 1.0, %v734
    %v991 = vsub.f32 1.0, %v735
    %v992 = vsub.f32 1.0, %v736
    %v993 = vsub.f32 1.0, %v737
    %v994 = vsub.f32 1.0, %v738
    %v995 = vsub.f32 1.0, %v739
    %v996 = vsub.f32 1.0, %v740
    %v997 = vsub.f32 1.0, %v741
    %v998 = vsub.f32 1.0, %v742
    %v999 = vsub.f32 1.0, %v743
    %v1000 = vsub.f32 1.0, %v744
    %v1001 = vsub.f32 1.0, %v745
    %v1002 = vsub.f32 1.0, %v746
    %v1003 = vsub.f32 1.0, %v747
    %v1004 = vsub.f32 1.0, %v748
    %v1005 = vsub.f32 1.0, %v749
    %v1006 = vsub.f32 1.0, %v750
    %v1007 = vsub.f32 1.0, %v751
    %v1008 = vsub.f32 1.0, %v752
    %v1009 = vsub.f32 1.0, %v753
    %v1010 = vsub.f32 1.0, %v754
    %v1011 = vsub.f32 1.0, %v755
    %v1012 = vsub.f32 1.0, %v756
    %v1013 = vsub.f32 1.0, %v757
    %v1014 = vsub.f32 1.0, %v758
    %v1015 = vsub.f32 1.0, %v759
    %v1016 = vsub.f32 1.0, %v760
    %v1017 = vsub.f32 1.0, %v761
    %v1018 = vsub.f32 1.0, %v762
    %v1019 = vsub.f32 1.0, %v763
    %v1020 = vsub.f32 1.0, %v764
    %v1021 = vsub.f32 1.0, %v765
    %v1022 = vsub.f32 1.0, %v766
    %v1023 = vsub.f32 1.0, %v767
    %v1024 = vsub.f32 1.0, %v768
    %v1025 = vsub.f32 1.0, %v769
    %v1026 = vsub.f32 1.0, %v770
    %v1027 = vsub.f32 1.0, %v771
    %v1028 = vsub.f32 1.0, %v772
    %v1029 = vsub.f32 1.0, %v773
    %v1030 = vsub.f32 1.0, %v774
    %v1031 = vsub.f32 1.0, %v775
    %v1032 = vsub.f32 1.0, %v776
    %v1033 = vsub.f32 1.0, %v777
    %v1034 = vsub.f32 1.0, %v778
    %v1035 = vsub.f32 1.0, %v779
    %v1036 = vsub.f32 1.0, %v780
    %v1037 = vsub.f32 1.0, %v781
    %v1038 = vsub.f32 1.0, %v782
    %v1039 = vsub.f32 1.0, %v783
    %v1040 = vsub.f32 1.0, %v784
    %v1041 = vsub.f32 1.0, %v785
    %v1042 = vsub.f32 1.0, %v786
    %v1043 = vsub.f32 1.0, %v787
    %v1044 = vsub.f32 1.0, %v788
    %v1045 = vsub.f32 1.0, %v789
    %v1046 = vsub.f32 1.0, %v790
    %v1047 = vsub.f32 1.0, %v791
    %v1048 = vsub.f32 1.0, %v792
    %v1049 = vsub.f32 1.0, %v793
    %v1050 = vsub.f32 1.0, %v794
    %v1051 = vsub.f32 1.0, %v795
    %v1052 = vsub.f32 1.0, %v796
    %v1053 = vsub.f32 1.0, %v797
    %v1054 = vsub.f32 1.0, %v798
    %v1055 = vsub.f32 1.0, %v799
    %v1056 = vsub.f32 1.0, %v800
    %v1057 = vsub.f32 1.0, %v801
    %v1058 = vsub.f32 1.0, %v802
    %v1059 = vsub.f32 1.0, %v803
    %v1060 = vsub.f32 1.0, %v804
    %v1061 = vsub.f32 1.0, %v805
    %v1062 = vsub.f32 1.0, %v806
    %v1063 = vsub.f32 1.0, %v807
    %v1064 = vmax.f32 %v808, 0.0
    %v1065 = vmax.f32 %v809, 0.0
    %v1066 = vmax.f32 %v810, 0.0
    %v1067 = vmax.f32 %v811, 0.0
    %v1068 = vmax.f32 %v812, 0.0
    %v1069 = vmax.f32 %v813, 0.0
    %v1070 = vmax.f32 %v814, 0.0
    %v1071 = vmax.f32 %v815, 0.0
    %v1072 = vmax.f32 %v816, 0.0
    %v1073 = vmax.f32 %v817, 0.0
    %v1074 = vmax.f32 %v818, 0.0
    %v1075 = vmax.f32 %v819, 0.0
    %v1076 = vmax.f32 %v820, 0.0
    %v1077 = vmax.f32 %v821, 0.0
    %v1078 = vmax.f32 %v822, 0.0
    %v1079 = vmax.f32 %v823, 0.0
    %v1080 = vmax.f32 %v824, 0.0
    %v1081 = vmax.f32 %v825, 0.0
    %v1082 = vmax.f32 %v826, 0.0
    %v1083 = vmax.f32 %v827, 0.0
    %v1084 = vmax.f32 %v828, 0.0
    %v1085 = vmax.f32 %v829, 0.0
    %v1086 = vmax.f32 %v830, 0.0
    %v1087 = vmax.f32 %v831, 0.0
    %v1088 = vmax.f32 %v832, 0.0
    %v1089 = vmax.f32 %v833, 0.0
    %v1090 = vmax.f32 %v834, 0.0
    %v1091 = vmax.f32 %v835, 0.0
    %v1092 = vmax.f32 %v836, 0.0
    %v1093 = vmax.f32 %v837, 0.0
    %v1094 = vmax.f32 %v838, 0.0
    %v1095 = vmax.f32 %v839, 0.0
    %v1096 = vmax.f32 %v840, 0.0
    %v1097 = vmax.f32 %v841, 0.0
    %v1098 = vmax.f32 %v842, 0.0
    %v1099 = vmax.f32 %v843, 0.0
    %v1100 = vmax.f32 %v844, 0.0
    %v1101 = vmax.f32 %v845, 0.0
    %v1102 = vmax.f32 %v846, 0.0
    %v1103 = vmax.f32 %v847, 0.0
    %v1104 = vmax.f32 %v848, 0.0
    %v1105 = vmax.f32 %v849, 0.0
    %v1106 = vmax.f32 %v850, 0.0
    %v1107 = vmax.f32 %v851, 0.0
    %v1108 = vmax.f32 %v852, 0.0
    %v1109 = vmax.f32 %v853, 0.0
    %v1110 = vmax.f32 %v854, 0.0
    %v1111 = vmax.f32 %v855, 0.0
    %v1112 = vmax.f32 %v856, 0.0
    %v1113 = vmax.f32 %v857, 0.0
    %v1114 = vmax.f32 %v858, 0.0
    %v1115 = vmax.f32 %v859, 0.0
    %v1116 = vmax.f32 %v860, 0.0
    %v1117 = vmax.f32 %v861, 0.0
    %v1118 = vmax.f32 %v862, 0.0
    %v1119 = vmax.f32 %v863, 0.0
    %v1120 = vmax.f32 %v864, 0.0
    %v1121 = vmax.f32 %v865, 0.0
    %v1122 = vmax.f32 %v866, 0.0
    %v1123 = vmax.f32 %v867, 0.0
    %v1124 = vmax.f32 %v868, 0.0
    %v1125 = vmax.f32 %v869, 0.0
    %v1126 = vmax.f32 %v870, 0.0
    %v1127 = vmax.f32 %v871, 0.0
    %v1128 = vmax.f32 %v872, 0.0
    %v1129 = vmax.f32 %v873, 0.0
    %v1130 = vmax.f32 %v874, 0.0
    %v1131 = vmax.f32 %v875, 0.0
    %v1132 = vmax.f32 %v876, 0.0
    %v1133 = vmax.f32 %v877, 0.0
    %v1134 = vmax.f32 %v878, 0.0
    %v1135 = vmax.f32 %v879, 0.0
    %v1136 = vmax.f32 %v880, 0.0
    %v1137 = vmax.f32 %v881, 0.0
    %v1138 = vmax.f32 %v882, 0.0
    %v1139 = vmax.f32 %v883, 0.0
    %v1140 = vmax.f32 %v884, 0.0
    %v1141 = vmax.f32 %v885, 0.0
    %v1142 = vmax.f32 %v886, 0.0
    %v1143 = vmax.f32 %v887, 0.0
    %v1144 = vmax.f32 %v888, 0.0
    %v1145 = vmax.f32 %v889, 0.0
    %v1146 = vmax.f32 %v890, 0.0
    %v1147 = vmax.f32 %v891, 0.0
    %v1148 = vmax.f32 %v892, 0.0
    %v1149 = vmax.f32 %v893, 0.0
    %v1150 = vmax.f32 %v894, 0.0
    %v1151 = vmax.f32 %v895, 0.0
    %v1152 = vmax.f32 %v896, 0.0
    %v1153 = vmax.f32 %v897, 0.0
    %v1154 = vmax.f32 %v898, 0.0
    %v1155 = vmax.f32 %v899, 0.0
    %v1156 = vmax.f32 %v900, 0.0
    %v1157 = vmax.f32 %v901, 0.0
    %v1158 = vmax.f32 %v902, 0.0
    %v1159 = vmax.f32 %v903, 0.0
    %v1160 = vmax.f32 %v904, 0.0
    %v1161 = vmax.f32 %v905, 0.0
    %v1162 = vmax.f32 %v906, 0.0
    %v1163 = vmax.f32 %v907, 0.0
    %v1164 = vmax.f32 %v908, 0.0
    %v1165 = vmax.f32 %v909, 0.0
    %v1166 = vmax.f32 %v910, 0.0
    %v1167 = vmax.f32 %v911, 0.0
    %v1168 = vmax.f32 %v912, 0.0
    %v1169 = vmax.f32 %v913, 0.0
    %v1170 = vmax.f32 %v914, 0.0
    %v1171 = vmax.f32 %v915, 0.0
    %v1172 = vmax.f32 %v916, 0.0
    %v1173 = vmax.f32 %v917, 0.0
    %v1174 = vmax.f32 %v918, 0.0
    %v1175 = vmax.f32 %v919, 0.0
    %v1176 = vmax.f32 %v920, 0.0
    %v1177 = vmax.f32 %v921, 0.0
    %v1178 = vmax.f32 %v922, 0.0
    %v1179 = vmax.f32 %v923, 0.0
    %v1180 = vmax.f32 %v924, 0.0
    %v1181 = vmax.f32 %v925, 0.0
    %v1182 = vmax.f32 %v926, 0.0
    %v1183 = vmax.f32 %v927, 0.0
    %v1184 = vmax.f32 %v928, 0.0
    %v1185 = vmax.f32 %v929, 0.0
    %v1186 = vmax.f32 %v930, 0.0
    %v1187 = vmax.f32 %v931, 0.0
    %v1188 = vmax.f32 %v932, 0.0
    %v1189 = vmax.f32 %v933, 0.0
    %v1190 = vmax.f32 %v934, 0.0
    %v1191 = vmax.f32 %v935, 0.0
    %v1192 = vmax.f32 %v936, 0.0
    %v1193 = vmax.f32 %v937, 0.0
    %v1194 = vmax.f32 %v938, 0.0
    %v1195 = vmax.f32 %v939, 0.0
    %v1196 = vmax.f32 %v940, 0.0
    %v1197 = vmax.f32 %v941, 0.0
    %v1198 = vmax.f32 %v942, 0.0
    %v1199 = vmax.f32 %v943, 0.0
    %v1200 = vmax.f32 %v944, 0.0
    %v1201 = vmax.f32 %v945, 0.0
    %v1202 = vmax.f32 %v946, 0.0
    %v1203 = vmax.f32 %v947, 0.0
    %v1204 = vmax.f32 %v948, 0.0
    %v1205 = vmax.f32 %v949, 0.0
    %v1206 = vmax.f32 %v950, 0.0
    %v1207 = vmax.f32 %v951, 0.0
    %v1208 = vmax.f32 %v952, 0.0
    %v1209 = vmax.f32 %v953, 0.0
    %v1210 = vmax.f32 %v954, 0.0
    %v1211 = vmax.f32 %v955, 0.0
    %v1212 = vmax.f32 %v956, 0.0
    %v1213 = vmax.f32 %v957, 0.0
    %v1214 = vmax.f32 %v958, 0.0
    %v1215 = vmax.f32 %v959, 0.0
    %v1216 = vmax.f32 %v960, 0.0
    %v1217 = vmax.f32 %v961, 0.0
    %v1218 = vmax.f32 %v962, 0.0
    %v1219 = vmax.f32 %v963, 0.0
    %v1220 = vmax.f32 %v964, 0.0
    %v1221 = vmax.f32 %v965, 0.0
    %v1222 = vmax.f32 %v966, 0.0
    %v1223 = vmax.f32 %v967, 0.0
    %v1224 = vmax.f32 %v968, 0.0
    %v1225 = vmax.f32 %v969, 0.0
    %v1226 = vmax.f32 %v970, 0.0
    %v1227 = vmax.f32 %v971, 0.0
    %v1228 = vmax.f32 %v972, 0.0
    %v1229 = vmax.f32 %v973, 0.0
    %v1230 = vmax.f32 %v974, 0.0
    %v1231 = vmax.f32 %v975, 0.0
    %v1232 = vmax.f32 %v976, 0.0
    %v1233 = vmax.f32 %v977, 0.0
    %v1234 = vmax.f32 %v978, 0.0
    %v1235 = vmax.f32 %v979, 0.0
    %v1236 = vmax.f32 %v980, 0.0
    %v1237 = vmax.f32 %v981, 0.0
    %v1238 = vmax.f32 %v982, 0.0
    %v1239 = vmax.f32 %v983, 0.0
    %v1240 = vmax.f32 %v984, 0.0
    %v1241 = vmax.f32 %v985, 0.0
    %v1242 = vmax.f32 %v986, 0.0
    %v1243 = vmax.f32 %v987, 0.0
    %v1244 = vmax.f32 %v988, 0.0
    %v1245 = vmax.f32 %v989, 0.0
    %v1246 = vmax.f32 %v990, 0.0
    %v1247 = vmax.f32 %v991, 0.0
    %v1248 = vmax.f32 %v992, 0.0
    %v1249 = vmax.f32 %v993, 0.0
    %v1250 = vmax.f32 %v994, 0.0
    %v1251 = vmax.f32 %v995, 0.0
    %v1252 = vmax.f32 %v996, 0.0
    %v1253 = vmax.f32 %v997, 0.0
    %v1254 = vmax.f32 %v998, 0.0
    %v1255 = vmax.f32 %v999, 0.0
    %v1256 = vmax.f32 %v1000, 0.0
    %v1257 = vmax.f32 %v1001, 0.0
    %v1258 = vmax.f32 %v1002, 0.0
    %v1259 = vmax.f32 %v1003, 0.0
    %v1260 = vmax.f32 %v1004, 0.0
    %v1261 = vmax.f32 %v1005, 0.0
    %v1262 = vmax.f32 %v1006, 0.0
    %v1263 = vmax.f32 %v1007, 0.0
    %v1264 = vmax.f32 %v1008, 0.0
    %v1265 = vmax.f32 %v1009, 0.0
    %v1266 = vmax.f32 %v1010, 0.0
    %v1267 = vmax.f32 %v1011, 0.0
    %v1268 = vmax.f32 %v1012, 0.0
    %v1269 = vmax.f32 %v1013, 0.0
    %v1270 = vmax.f32 %v1014, 0.0
    %v1271 = vmax.f32 %v1015, 0.0
    %v1272 = vmax.f32 %v1016, 0.0
    %v1273 = vmax.f32 %v1017, 0.0
    %v1274 = vmax.f32 %v1018, 0.0
    %v1275 = vmax.f32 %v1019, 0.0
    %v1276 = vmax.f32 %v1020, 0.0
    %v1277 = vmax.f32 %v1021, 0.0
    %v1278 = vmax.f32 %v1022, 0.0
    %v1279 = vmax.f32 %v1023, 0.0
    %v1280 = vmax.f32 %v1024, 0.0
    %v1281 = vmax.f32 %v1025, 0.0
    %v1282 = vmax.f32 %v1026, 0.0
    %v1283 = vmax.f32 %v1027, 0.0
    %v1284 = vmax.f32 %v1028, 0.0
    %v1285 = vmax.f32 %v1029, 0.0
    %v1286 = vmax.f32 %v1030, 0.0
    %v1287 = vmax.f32 %v1031, 0.0
    %v1288 = vmax.f32 %v1032, 0.0
    %v1289 = vmax.f32 %v1033, 0.0
    %v1290 = vmax.f32 %v1034, 0.0
    %v1291 = vmax.f32 %v1035, 0.0
    %v1292 = vmax.f32 %v1036, 0.0
    %v1293 = vmax.f32 %v1037, 0.0
    %v1294 = vmax.f32 %v1038, 0.0
    %v1295 = vmax.f32 %v1039, 0.0
    %v1296 = vmax.f32 %v1040, 0.0
    %v1297 = vmax.f32 %v1041, 0.0
    %v1298 = vmax.f32 %v1042, 0.0
    %v1299 = vmax.f32 %v1043, 0.0
    %v1300 = vmax.f32 %v1044, 0.0
    %v1301 = vmax.f32 %v1045, 0.0
    %v1302 = vmax.f32 %v1046, 0.0
    %v1303 = vmax.f32 %v1047, 0.0
    %v1304 = vmax.f32 %v1048, 0.0
    %v1305 = vmax.f32 %v1049, 0.0
    %v1306 = vmax.f32 %v1050, 0.0
    %v1307 = vmax.f32 %v1051, 0.0
    %v1308 = vmax.f32 %v1052, 0.0
    %v1309 = vmax.f32 %v1053, 0.0
    %v1310 = vmax.f32 %v1054, 0.0
    %v1311 = vmax.f32 %v1055, 0.0
    %v1312 = vmax.f32 %v1056, 0.0
    %v1313 = vmax.f32 %v1057, 0.0
    %v1314 = vmax.f32 %v1058, 0.0
    %v1315 = vmax.f32 %v1059, 0.0
    %v1316 = vmax.f32 %v1060, 0.0
    %v1317 = vmax.f32 %v1061, 0.0
    %v1318 = vmax.f32 %v1062, 0.0
    %v1319 = vmax.f32 %v1063, 0.0
    %s1320 = smul.u32 0, 2048
    %v1321 = vlaneseq
    %v1322 = vshrl.u32 %v1321, 7
    %v1323 = vadd.s32 %v1322, 8
    %v1324 = vadd.s32 %v1322, 16
    %v1325 = vadd.s32 %v1322, 24
    %v1326 = vadd.s32 %v1322, 32
    %v1327 = vadd.s32 %v1322, 40
    %v1328 = vadd.s32 %v1322, 48
    %v1329 = vadd.s32 %v1322, 56
    %v1330 = vadd.s32 %v1322, 64
    %v1331 = vadd.s32 %v1322, 72
    %v1332 = vadd.s32 %v1322, 80
    %v1333 = vadd.s32 %v1322, 88
    %v1334 = vadd.s32 %v1322, 96
    %v1335 = vadd.s32 %v1322, 104
    %v1336 = vadd.s32 %v1322, 112
    %v1337 = vadd.s32 %v1322, 120
    %v1338 = vadd.s32 %v1322, 128
    %v1339 = vadd.s32 %v1322, 136
    %v1340 = vadd.s32 %v1322, 144
    %v1341 = vadd.s32 %v1322, 152
    %v1342 = vadd.s32 %v1322, 160
    %v1343 = vadd.s32 %v1322, 168
    %v1344 = vadd.s32 %v1322, 176
    %v1345 = vadd.s32 %v1322, 184
    %v1346 = vadd.s32 %v1322, 192
    %v1347 = vadd.s32 %v1322, 200
    %v1348 = vadd.s32 %v1322, 208
    %v1349 = vadd.s32 %v1322, 216
    %v1350 = vadd.s32 %v1322, 224
    %v1351 = vadd.s32 %v1322, 232
    %v1352 = vadd.s32 %v1322, 240
    %v1353 = vadd.s32 %v1322, 248
    %v1354 = vadd.s32 %v1322, 256
    %v1355 = vadd.s32 %v1322, 264
    %v1356 = vadd.s32 %v1322, 272
    %v1357 = vadd.s32 %v1322, 280
    %v1358 = vadd.s32 %v1322, 288
    %v1359 = vadd.s32 %v1322, 296
    %v1360 = vadd.s32 %v1322, 304
    %v1361 = vadd.s32 %v1322, 312
    %v1362 = vadd.s32 %v1322, 320
    %v1363 = vadd.s32 %v1322, 328
    %v1364 = vadd.s32 %v1322, 336
    %v1365 = vadd.s32 %v1322, 344
    %v1366 = vadd.s32 %v1322, 352
    %v1367 = vadd.s32 %v1322, 360
    %v1368 = vadd.s32 %v1322, 368
    %v1369 = vadd.s32 %v1322, 376
    %v1370 = vadd.s32 %v1322, 384
    %v1371 = vadd.s32 %v1322, 392
    %v1372 = vadd.s32 %v1322, 400
    %v1373 = vadd.s32 %v1322, 408
    %v1374 = vadd.s32 %v1322, 416
    %v1375 = vadd.s32 %v1322, 424
    %v1376 = vadd.s32 %v1322, 432
    %v1377 = vadd.s32 %v1322, 440
    %v1378 = vadd.s32 %v1322, 448
    %v1379 = vadd.s32 %v1322, 456
    %v1380 = vadd.s32 %v1322, 464
    %v1381 = vadd.s32 %v1322, 472
    %v1382 = vadd.s32 %v1322, 480
    %v1383 = vadd.s32 %v1322, 488
    %v1384 = vadd.s32 %v1322, 496
    %v1385 = vadd.s32 %v1322, 504
    %v1386 = vadd.s32 %v1322, 512
    %v1387 = vadd.s32 %v1322, 520
    %v1388 = vadd.s32 %v1322, 528
    %v1389 = vadd.s32 %v1322, 536
    %v1390 = vadd.s32 %v1322, 544
    %v1391 = vadd.s32 %v1322, 552
    %v1392 = vadd.s32 %v1322, 560
    %v1393 = vadd.s32 %v1322, 568
    %v1394 = vadd.s32 %v1322, 576
    %v1395 = vadd.s32 %v1322, 584
    %v1396 = vadd.s32 %v1322, 592
    %v1397 = vadd.s32 %v1322, 600
    %v1398 = vadd.s32 %v1322, 608
    %v1399 = vadd.s32 %v1322, 616
    %v1400 = vadd.s32 %v1322, 624
    %v1401 = vadd.s32 %v1322, 632
    %v1402 = vadd.s32 %v1322, 640
    %v1403 = vadd.s32 %v1322, 648
    %v1404 = vadd.s32 %v1322, 656
    %v1405 = vadd.s32 %v1322, 664
    %v1406 = vadd.s32 %v1322, 672
    %v1407 = vadd.s32 %v1322, 680
    %v1408 = vadd.s32 %v1322, 688
    %v1409 = vadd.s32 %v1322, 696
    %v1410 = vadd.s32 %v1322, 704
    %v1411 = vadd.s32 %v1322, 712
    %v1412 = vadd.s32 %v1322, 720
    %v1413 = vadd.s32 %v1322, 728
    %v1414 = vadd.s32 %v1322, 736
    %v1415 = vadd.s32 %v1322, 744
    %v1416 = vadd.s32 %v1322, 752
    %v1417 = vadd.s32 %v1322, 760
    %v1418 = vadd.s32 %v1322, 768
    %v1419 = vadd.s32 %v1322, 776
    %v1420 = vadd.s32 %v1322, 784
    %v1421 = vadd.s32 %v1322, 792
    %v1422 = vadd.s32 %v1322, 800
    %v1423 = vadd.s32 %v1322, 808
    %v1424 = vadd.s32 %v1322, 816
    %v1425 = vadd.s32 %v1322, 824
    %v1426 = vadd.s32 %v1322, 832
    %v1427 = vadd.s32 %v1322, 840
    %v1428 = vadd.s32 %v1322, 848
    %v1429 = vadd.s32 %v1322, 856
    %v1430 = vadd.s32 %v1322, 864
    %v1431 = vadd.s32 %v1322, 872
    %v1432 = vadd.s32 %v1322, 880
    %v1433 = vadd.s32 %v1322, 888
    %v1434 = vadd.s32 %v1322, 896
    %v1435 = vadd.s32 %v1322, 904
    %v1436 = vadd.s32 %v1322, 912
    %v1437 = vadd.s32 %v1322, 920
    %v1438 = vadd.s32 %v1322, 928
    %v1439 = vadd.s32 %v1322, 936
    %v1440 = vadd.s32 %v1322, 944
    %v1441 = vadd.s32 %v1322, 952
    %v1442 = vadd.s32 %v1322, 960
    %v1443 = vadd.s32 %v1322, 968
    %v1444 = vadd.s32 %v1322, 976
    %v1445 = vadd.s32 %v1322, 984
    %v1446 = vadd.s32 %v1322, 992
    %v1447 = vadd.s32 %v1322, 1000
    %v1448 = vadd.s32 %v1322, 1008
    %v1449 = vadd.s32 %v1322, 1016
    %v1450 = vadd.s32 %v1322, 1024
    %v1451 = vadd.s32 %v1322, 1032
    %v1452 = vadd.s32 %v1322, 1040
    %v1453 = vadd.s32 %v1322, 1048
    %v1454 = vadd.s32 %v1322, 1056
    %v1455 = vadd.s32 %v1322, 1064
    %v1456 = vadd.s32 %v1322, 1072
    %v1457 = vadd.s32 %v1322, 1080
    %v1458 = vadd.s32 %v1322, 1088
    %v1459 = vadd.s32 %v1322, 1096
    %v1460 = vadd.s32 %v1322, 1104
    %v1461 = vadd.s32 %v1322, 1112
    %v1462 = vadd.s32 %v1322, 1120
    %v1463 = vadd.s32 %v1322, 1128
    %v1464 = vadd.s32 %v1322, 1136
    %v1465 = vadd.s32 %v1322, 1144
    %v1466 = vadd.s32 %v1322, 1152
    %v1467 = vadd.s32 %v1322, 1160
    %v1468 = vadd.s32 %v1322, 1168
    %v1469 = vadd.s32 %v1322, 1176
    %v1470 = vadd.s32 %v1322, 1184
    %v1471 = vadd.s32 %v1322, 1192
    %v1472 = vadd.s32 %v1322, 1200
    %v1473 = vadd.s32 %v1322, 1208
    %v1474 = vadd.s32 %v1322, 1216
    %v1475 = vadd.s32 %v1322, 1224
    %v1476 = vadd.s32 %v1322, 1232
    %v1477 = vadd.s32 %v1322, 1240
    %v1478 = vadd.s32 %v1322, 1248
    %v1479 = vadd.s32 %v1322, 1256
    %v1480 = vadd.s32 %v1322, 1264
    %v1481 = vadd.s32 %v1322, 1272
    %v1482 = vadd.s32 %v1322, 1280
    %v1483 = vadd.s32 %v1322, 1288
    %v1484 = vadd.s32 %v1322, 1296
    %v1485 = vadd.s32 %v1322, 1304
    %v1486 = vadd.s32 %v1322, 1312
    %v1487 = vadd.s32 %v1322, 1320
    %v1488 = vadd.s32 %v1322, 1328
    %v1489 = vadd.s32 %v1322, 1336
    %v1490 = vadd.s32 %v1322, 1344
    %v1491 = vadd.s32 %v1322, 1352
    %v1492 = vadd.s32 %v1322, 1360
    %v1493 = vadd.s32 %v1322, 1368
    %v1494 = vadd.s32 %v1322, 1376
    %v1495 = vadd.s32 %v1322, 1384
    %v1496 = vadd.s32 %v1322, 1392
    %v1497 = vadd.s32 %v1322, 1400
    %v1498 = vadd.s32 %v1322, 1408
    %v1499 = vadd.s32 %v1322, 1416
    %v1500 = vadd.s32 %v1322, 1424
    %v1501 = vadd.s32 %v1322, 1432
    %v1502 = vadd.s32 %v1322, 1440
    %v1503 = vadd.s32 %v1322, 1448
    %v1504 = vadd.s32 %v1322, 1456
    %v1505 = vadd.s32 %v1322, 1464
    %v1506 = vadd.s32 %v1322, 1472
    %v1507 = vadd.s32 %v1322, 1480
    %v1508 = vadd.s32 %v1322, 1488
    %v1509 = vadd.s32 %v1322, 1496
    %v1510 = vadd.s32 %v1322, 1504
    %v1511 = vadd.s32 %v1322, 1512
    %v1512 = vadd.s32 %v1322, 1520
    %v1513 = vadd.s32 %v1322, 1528
    %v1514 = vadd.s32 %v1322, 1536
    %v1515 = vadd.s32 %v1322, 1544
    %v1516 = vadd.s32 %v1322, 1552
    %v1517 = vadd.s32 %v1322, 1560
    %v1518 = vadd.s32 %v1322, 1568
    %v1519 = vadd.s32 %v1322, 1576
    %v1520 = vadd.s32 %v1322, 1584
    %v1521 = vadd.s32 %v1322, 1592
    %v1522 = vadd.s32 %v1322, 1600
    %v1523 = vadd.s32 %v1322, 1608
    %v1524 = vadd.s32 %v1322, 1616
    %v1525 = vadd.s32 %v1322, 1624
    %v1526 = vadd.s32 %v1322, 1632
    %v1527 = vadd.s32 %v1322, 1640
    %v1528 = vadd.s32 %v1322, 1648
    %v1529 = vadd.s32 %v1322, 1656
    %v1530 = vadd.s32 %v1322, 1664
    %v1531 = vadd.s32 %v1322, 1672
    %v1532 = vadd.s32 %v1322, 1680
    %v1533 = vadd.s32 %v1322, 1688
    %v1534 = vadd.s32 %v1322, 1696
    %v1535 = vadd.s32 %v1322, 1704
    %v1536 = vadd.s32 %v1322, 1712
    %v1537 = vadd.s32 %v1322, 1720
    %v1538 = vadd.s32 %v1322, 1728
    %v1539 = vadd.s32 %v1322, 1736
    %v1540 = vadd.s32 %v1322, 1744
    %v1541 = vadd.s32 %v1322, 1752
    %v1542 = vadd.s32 %v1322, 1760
    %v1543 = vadd.s32 %v1322, 1768
    %v1544 = vadd.s32 %v1322, 1776
    %v1545 = vadd.s32 %v1322, 1784
    %v1546 = vadd.s32 %v1322, 1792
    %v1547 = vadd.s32 %v1322, 1800
    %v1548 = vadd.s32 %v1322, 1808
    %v1549 = vadd.s32 %v1322, 1816
    %v1550 = vadd.s32 %v1322, 1824
    %v1551 = vadd.s32 %v1322, 1832
    %v1552 = vadd.s32 %v1322, 1840
    %v1553 = vadd.s32 %v1322, 1848
    %v1554 = vadd.s32 %v1322, 1856
    %v1555 = vadd.s32 %v1322, 1864
    %v1556 = vadd.s32 %v1322, 1872
    %v1557 = vadd.s32 %v1322, 1880
    %v1558 = vadd.s32 %v1322, 1888
    %v1559 = vadd.s32 %v1322, 1896
    %v1560 = vadd.s32 %v1322, 1904
    %v1561 = vadd.s32 %v1322, 1912
    %v1562 = vadd.s32 %v1322, 1920
    %v1563 = vadd.s32 %v1322, 1928
    %v1564 = vadd.s32 %v1322, 1936
    %v1565 = vadd.s32 %v1322, 1944
    %v1566 = vadd.s32 %v1322, 1952
    %v1567 = vadd.s32 %v1322, 1960
    %v1568 = vadd.s32 %v1322, 1968
    %v1569 = vadd.s32 %v1322, 1976
    %v1570 = vadd.s32 %v1322, 1984
    %v1571 = vadd.s32 %v1322, 1992
    %v1572 = vadd.s32 %v1322, 2000
    %v1573 = vadd.s32 %v1322, 2008
    %v1574 = vadd.s32 %v1322, 2016
    %v1575 = vadd.s32 %v1322, 2024
    %v1576 = vadd.s32 %v1322, 2032
    %v1577 = vadd.s32 %v1322, 2040
    %v1578 = vstv %s1320
    %v1579 = vadd.s32 %v1578, %v1322
    %v1580 = vadd.s32 %v1578, %v1323
    %v1581 = vadd.s32 %v1578, %v1324
    %v1582 = vadd.s32 %v1578, %v1325
    %v1583 = vadd.s32 %v1578, %v1326
    %v1584 = vadd.s32 %v1578, %v1327
    %v1585 = vadd.s32 %v1578, %v1328
    %v1586 = vadd.s32 %v1578, %v1329
    %v1587 = vadd.s32 %v1578, %v1330
    %v1588 = vadd.s32 %v1578, %v1331
    %v1589 = vadd.s32 %v1578, %v1332
    %v1590 = vadd.s32 %v1578, %v1333
    %v1591 = vadd.s32 %v1578, %v1334
    %v1592 = vadd.s32 %v1578, %v1335
    %v1593 = vadd.s32 %v1578, %v1336
    %v1594 = vadd.s32 %v1578, %v1337
    %v1595 = vadd.s32 %v1578, %v1338
    %v1596 = vadd.s32 %v1578, %v1339
    %v1597 = vadd.s32 %v1578, %v1340
    %v1598 = vadd.s32 %v1578, %v1341
    %v1599 = vadd.s32 %v1578, %v1342
    %v1600 = vadd.s32 %v1578, %v1343
    %v1601 = vadd.s32 %v1578, %v1344
    %v1602 = vadd.s32 %v1578, %v1345
    %v1603 = vadd.s32 %v1578, %v1346
    %v1604 = vadd.s32 %v1578, %v1347
    %v1605 = vadd.s32 %v1578, %v1348
    %v1606 = vadd.s32 %v1578, %v1349
    %v1607 = vadd.s32 %v1578, %v1350
    %v1608 = vadd.s32 %v1578, %v1351
    %v1609 = vadd.s32 %v1578, %v1352
    %v1610 = vadd.s32 %v1578, %v1353
    %v1611 = vadd.s32 %v1578, %v1354
    %v1612 = vadd.s32 %v1578, %v1355
    %v1613 = vadd.s32 %v1578, %v1356
    %v1614 = vadd.s32 %v1578, %v1357
    %v1615 = vadd.s32 %v1578, %v1358
    %v1616 = vadd.s32 %v1578, %v1359
    %v1617 = vadd.s32 %v1578, %v1360
    %v1618 = vadd.s32 %v1578, %v1361
    %v1619 = vadd.s32 %v1578, %v1362
    %v1620 = vadd.s32 %v1578, %v1363
    %v1621 = vadd.s32 %v1578, %v1364
    %v1622 = vadd.s32 %v1578, %v1365
    %v1623 = vadd.s32 %v1578, %v1366
    %v1624 = vadd.s32 %v1578, %v1367
    %v1625 = vadd.s32 %v1578, %v1368
    %v1626 = vadd.s32 %v1578, %v1369
    %v1627 = vadd.s32 %v1578, %v1370
    %v1628 = vadd.s32 %v1578, %v1371
    %v1629 = vadd.s32 %v1578, %v1372
    %v1630 = vadd.s32 %v1578, %v1373
    %v1631 = vadd.s32 %v1578, %v1374
    %v1632 = vadd.s32 %v1578, %v1375
    %v1633 = vadd.s32 %v1578, %v1376
    %v1634 = vadd.s32 %v1578, %v1377
    %v1635 = vadd.s32 %v1578, %v1378
    %v1636 = vadd.s32 %v1578, %v1379
    %v1637 = vadd.s32 %v1578, %v1380
    %v1638 = vadd.s32 %v1578, %v1381
    %v1639 = vadd.s32 %v1578, %v1382
    %v1640 = vadd.s32 %v1578, %v1383
    %v1641 = vadd.s32 %v1578, %v1384
    %v1642 = vadd.s32 %v1578, %v1385
    %v1643 = vadd.s32 %v1578, %v1386
    %v1644 = vadd.s32 %v1578, %v1387
    %v1645 = vadd.s32 %v1578, %v1388
    %v1646 = vadd.s32 %v1578, %v1389
    %v1647 = vadd.s32 %v1578, %v1390
    %v1648 = vadd.s32 %v1578, %v1391
    %v1649 = vadd.s32 %v1578, %v1392
    %v1650 = vadd.s32 %v1578, %v1393
    %v1651 = vadd.s32 %v1578, %v1394
    %v1652 = vadd.s32 %v1578, %v1395
    %v1653 = vadd.s32 %v1578, %v1396
    %v1654 = vadd.s32 %v1578, %v1397
    %v1655 = vadd.s32 %v1578, %v1398
    %v1656 = vadd.s32 %v1578, %v1399
    %v1657 = vadd.s32 %v1578, %v1400
    %v1658 = vadd.s32 %v1578, %v1401
    %v1659 = vadd.s32 %v1578, %v1402
    %v1660 = vadd.s32 %v1578, %v1403
    %v1661 = vadd.s32 %v1578, %v1404
    %v1662 = vadd.s32 %v1578, %v1405
    %v1663 = vadd.s32 %v1578, %v1406
    %v1664 = vadd.s32 %v1578, %v1407
    %v1665 = vadd.s32 %v1578, %v1408
    %v1666 = vadd.s32 %v1578, %v1409
    %v1667 = vadd.s32 %v1578, %v1410
    %v1668 = vadd.s32 %v1578, %v1411
    %v1669 = vadd.s32 %v1578, %v1412
    %v1670 = vadd.s32 %v1578, %v1413
    %v1671 = vadd.s32 %v1578, %v1414
    %v1672 = vadd.s32 %v1578, %v1415
    %v1673 = vadd.s32 %v1578, %v1416
    %v1674 = vadd.s32 %v1578, %v1417
    %v1675 = vadd.s32 %v1578, %v1418
    %v1676 = vadd.s32 %v1578, %v1419
    %v1677 = vadd.s32 %v1578, %v1420
    %v1678 = vadd.s32 %v1578, %v1421
    %v1679 = vadd.s32 %v1578, %v1422
    %v1680 = vadd.s32 %v1578, %v1423
    %v1681 = vadd.s32 %v1578, %v1424
    %v1682 = vadd.s32 %v1578, %v1425
    %v1683 = vadd.s32 %v1578, %v1426
    %v1684 = vadd.s32 %v1578, %v1427
    %v1685 = vadd.s32 %v1578, %v1428
    %v1686 = vadd.s32 %v1578, %v1429
    %v1687 = vadd.s32 %v1578, %v1430
    %v1688 = vadd.s32 %v1578, %v1431
    %v1689 = vadd.s32 %v1578, %v1432
    %v1690 = vadd.s32 %v1578, %v1433
    %v1691 = vadd.s32 %v1578, %v1434
    %v1692 = vadd.s32 %v1578, %v1435
    %v1693 = vadd.s32 %v1578, %v1436
    %v1694 = vadd.s32 %v1578, %v1437
    %v1695 = vadd.s32 %v1578, %v1438
    %v1696 = vadd.s32 %v1578, %v1439
    %v1697 = vadd.s32 %v1578, %v1440
    %v1698 = vadd.s32 %v1578, %v1441
    %v1699 = vadd.s32 %v1578, %v1442
    %v1700 = vadd.s32 %v1578, %v1443
    %v1701 = vadd.s32 %v1578, %v1444
    %v1702 = vadd.s32 %v1578, %v1445
    %v1703 = vadd.s32 %v1578, %v1446
    %v1704 = vadd.s32 %v1578, %v1447
    %v1705 = vadd.s32 %v1578, %v1448
    %v1706 = vadd.s32 %v1578, %v1449
    %v1707 = vadd.s32 %v1578, %v1450
    %v1708 = vadd.s32 %v1578, %v1451
    %v1709 = vadd.s32 %v1578, %v1452
    %v1710 = vadd.s32 %v1578, %v1453
    %v1711 = vadd.s32 %v1578, %v1454
    %v1712 = vadd.s32 %v1578, %v1455
    %v1713 = vadd.s32 %v1578, %v1456
    %v1714 = vadd.s32 %v1578, %v1457
    %v1715 = vadd.s32 %v1578, %v1458
    %v1716 = vadd.s32 %v1578, %v1459
    %v1717 = vadd.s32 %v1578, %v1460
    %v1718 = vadd.s32 %v1578, %v1461
    %v1719 = vadd.s32 %v1578, %v1462
    %v1720 = vadd.s32 %v1578, %v1463
    %v1721 = vadd.s32 %v1578, %v1464
    %v1722 = vadd.s32 %v1578, %v1465
    %v1723 = vadd.s32 %v1578, %v1466
    %v1724 = vadd.s32 %v1578, %v1467
    %v1725 = vadd.s32 %v1578, %v1468
    %v1726 = vadd.s32 %v1578, %v1469
    %v1727 = vadd.s32 %v1578, %v1470
    %v1728 = vadd.s32 %v1578, %v1471
    %v1729 = vadd.s32 %v1578, %v1472
    %v1730 = vadd.s32 %v1578, %v1473
    %v1731 = vadd.s32 %v1578, %v1474
    %v1732 = vadd.s32 %v1578, %v1475
    %v1733 = vadd.s32 %v1578, %v1476
    %v1734 = vadd.s32 %v1578, %v1477
    %v1735 = vadd.s32 %v1578, %v1478
    %v1736 = vadd.s32 %v1578, %v1479
    %v1737 = vadd.s32 %v1578, %v1480
    %v1738 = vadd.s32 %v1578, %v1481
    %v1739 = vadd.s32 %v1578, %v1482
    %v1740 = vadd.s32 %v1578, %v1483
    %v1741 = vadd.s32 %v1578, %v1484
    %v1742 = vadd.s32 %v1578, %v1485
    %v1743 = vadd.s32 %v1578, %v1486
    %v1744 = vadd.s32 %v1578, %v1487
    %v1745 = vadd.s32 %v1578, %v1488
    %v1746 = vadd.s32 %v1578, %v1489
    %v1747 = vadd.s32 %v1578, %v1490
    %v1748 = vadd.s32 %v1578, %v1491
    %v1749 = vadd.s32 %v1578, %v1492
    %v1750 = vadd.s32 %v1578, %v1493
    %v1751 = vadd.s32 %v1578, %v1494
    %v1752 = vadd.s32 %v1578, %v1495
    %v1753 = vadd.s32 %v1578, %v1496
    %v1754 = vadd.s32 %v1578, %v1497
    %v1755 = vadd.s32 %v1578, %v1498
    %v1756 = vadd.s32 %v1578, %v1499
    %v1757 = vadd.s32 %v1578, %v1500
    %v1758 = vadd.s32 %v1578, %v1501
    %v1759 = vadd.s32 %v1578, %v1502
    %v1760 = vadd.s32 %v1578, %v1503
    %v1761 = vadd.s32 %v1578, %v1504
    %v1762 = vadd.s32 %v1578, %v1505
    %v1763 = vadd.s32 %v1578, %v1506
    %v1764 = vadd.s32 %v1578, %v1507
    %v1765 = vadd.s32 %v1578, %v1508
    %v1766 = vadd.s32 %v1578, %v1509
    %v1767 = vadd.s32 %v1578, %v1510
    %v1768 = vadd.s32 %v1578, %v1511
    %v1769 = vadd.s32 %v1578, %v1512
    %v1770 = vadd.s32 %v1578, %v1513
    %v1771 = vadd.s32 %v1578, %v1514
    %v1772 = vadd.s32 %v1578, %v1515
    %v1773 = vadd.s32 %v1578, %v1516
    %v1774 = vadd.s32 %v1578, %v1517
    %v1775 = vadd.s32 %v1578, %v1518
    %v1776 = vadd.s32 %v1578, %v1519
    %v1777 = vadd.s32 %v1578, %v1520
    %v1778 = vadd.s32 %v1578, %v1521
    %v1779 = vadd.s32 %v1578, %v1522
    %v1780 = vadd.s32 %v1578, %v1523
    %v1781 = vadd.s32 %v1578, %v1524
    %v1782 = vadd.s32 %v1578, %v1525
    %v1783 = vadd.s32 %v1578, %v1526
    %v1784 = vadd.s32 %v1578, %v1527
    %v1785 = vadd.s32 %v1578, %v1528
    %v1786 = vadd.s32 %v1578, %v1529
    %v1787 = vadd.s32 %v1578, %v1530
    %v1788 = vadd.s32 %v1578, %v1531
    %v1789 = vadd.s32 %v1578, %v1532
    %v1790 = vadd.s32 %v1578, %v1533
    %v1791 = vadd.s32 %v1578, %v1534
    %v1792 = vadd.s32 %v1578, %v1535
    %v1793 = vadd.s32 %v1578, %v1536
    %v1794 = vadd.s32 %v1578, %v1537
    %v1795 = vadd.s32 %v1578, %v1538
    %v1796 = vadd.s32 %v1578, %v1539
    %v1797 = vadd.s32 %v1578, %v1540
    %v1798 = vadd.s32 %v1578, %v1541
    %v1799 = vadd.s32 %v1578, %v1542
    %v1800 = vadd.s32 %v1578, %v1543
    %v1801 = vadd.s32 %v1578, %v1544
    %v1802 = vadd.s32 %v1578, %v1545
    %v1803 = vadd.s32 %v1578, %v1546
    %v1804 = vadd.s32 %v1578, %v1547
    %v1805 = vadd.s32 %v1578, %v1548
    %v1806 = vadd.s32 %v1578, %v1549
    %v1807 = vadd.s32 %v1578, %v1550
    %v1808 = vadd.s32 %v1578, %v1551
    %v1809 = vadd.s32 %v1578, %v1552
    %v1810 = vadd.s32 %v1578, %v1553
    %v1811 = vadd.s32 %v1578, %v1554
    %v1812 = vadd.s32 %v1578, %v1555
    %v1813 = vadd.s32 %v1578, %v1556
    %v1814 = vadd.s32 %v1578, %v1557
    %v1815 = vadd.s32 %v1578, %v1558
    %v1816 = vadd.s32 %v1578, %v1559
    %v1817 = vadd.s32 %v1578, %v1560
    %v1818 = vadd.s32 %v1578, %v1561
    %v1819 = vadd.s32 %v1578, %v1562
    %v1820 = vadd.s32 %v1578, %v1563
    %v1821 = vadd.s32 %v1578, %v1564
    %v1822 = vadd.s32 %v1578, %v1565
    %v1823 = vadd.s32 %v1578, %v1566
    %v1824 = vadd.s32 %v1578, %v1567
    %v1825 = vadd.s32 %v1578, %v1568
    %v1826 = vadd.s32 %v1578, %v1569
    %v1827 = vadd.s32 %v1578, %v1570
    %v1828 = vadd.s32 %v1578, %v1571
    %v1829 = vadd.s32 %v1578, %v1572
    %v1830 = vadd.s32 %v1578, %v1573
    %v1831 = vadd.s32 %v1578, %v1574
    %v1832 = vadd.s32 %v1578, %v1575
    %v1833 = vadd.s32 %v1578, %v1576
    %v1834 = vadd.s32 %v1578, %v1577
    %vm1835 = vcmp.lt.s32.totalorder %v1579, 16
    %vm1836 = vcmp.lt.s32.totalorder %v1580, 16
    %vm1837 = vcmp.lt.s32.totalorder %v1581, 16
    %vm1838 = vcmp.lt.s32.totalorder %v1582, 16
    %vm1839 = vcmp.lt.s32.totalorder %v1583, 16
    %vm1840 = vcmp.lt.s32.totalorder %v1584, 16
    %vm1841 = vcmp.lt.s32.totalorder %v1585, 16
    %vm1842 = vcmp.lt.s32.totalorder %v1586, 16
    %vm1843 = vcmp.lt.s32.totalorder %v1587, 16
    %vm1844 = vcmp.lt.s32.totalorder %v1588, 16
    %vm1845 = vcmp.lt.s32.totalorder %v1589, 16
    %vm1846 = vcmp.lt.s32.totalorder %v1590, 16
    %vm1847 = vcmp.lt.s32.totalorder %v1591, 16
    %vm1848 = vcmp.lt.s32.totalorder %v1592, 16
    %vm1849 = vcmp.lt.s32.totalorder %v1593, 16
    %vm1850 = vcmp.lt.s32.totalorder %v1594, 16
    %vm1851 = vcmp.lt.s32.totalorder %v1595, 16
    %vm1852 = vcmp.lt.s32.totalorder %v1596, 16
    %vm1853 = vcmp.lt.s32.totalorder %v1597, 16
    %vm1854 = vcmp.lt.s32.totalorder %v1598, 16
    %vm1855 = vcmp.lt.s32.totalorder %v1599, 16
    %vm1856 = vcmp.lt.s32.totalorder %v1600, 16
    %vm1857 = vcmp.lt.s32.totalorder %v1601, 16
    %vm1858 = vcmp.lt.s32.totalorder %v1602, 16
    %vm1859 = vcmp.lt.s32.totalorder %v1603, 16
    %vm1860 = vcmp.lt.s32.totalorder %v1604, 16
    %vm1861 = vcmp.lt.s32.totalorder %v1605, 16
    %vm1862 = vcmp.lt.s32.totalorder %v1606, 16
    %vm1863 = vcmp.lt.s32.totalorder %v1607, 16
    %vm1864 = vcmp.lt.s32.totalorder %v1608, 16
    %vm1865 = vcmp.lt.s32.totalorder %v1609, 16
    %vm1866 = vcmp.lt.s32.totalorder %v1610, 16
    %vm1867 = vcmp.lt.s32.totalorder %v1611, 16
    %vm1868 = vcmp.lt.s32.totalorder %v1612, 16
    %vm1869 = vcmp.lt.s32.totalorder %v1613, 16
    %vm1870 = vcmp.lt.s32.totalorder %v1614, 16
    %vm1871 = vcmp.lt.s32.totalorder %v1615, 16
    %vm1872 = vcmp.lt.s32.totalorder %v1616, 16
    %vm1873 = vcmp.lt.s32.totalorder %v1617, 16
    %vm1874 = vcmp.lt.s32.totalorder %v1618, 16
    %vm1875 = vcmp.lt.s32.totalorder %v1619, 16
    %vm1876 = vcmp.lt.s32.totalorder %v1620, 16
    %vm1877 = vcmp.lt.s32.totalorder %v1621, 16
    %vm1878 = vcmp.lt.s32.totalorder %v1622, 16
    %vm1879 = vcmp.lt.s32.totalorder %v1623, 16
    %vm1880 = vcmp.lt.s32.totalorder %v1624, 16
    %vm1881 = vcmp.lt.s32.totalorder %v1625, 16
    %vm1882 = vcmp.lt.s32.totalorder %v1626, 16
    %vm1883 = vcmp.lt.s32.totalorder %v1627, 16
    %vm1884 = vcmp.lt.s32.totalorder %v1628, 16
    %vm1885 = vcmp.lt.s32.totalorder %v1629, 16
    %vm1886 = vcmp.lt.s32.totalorder %v1630, 16
    %vm1887 = vcmp.lt.s32.totalorder %v1631, 16
    %vm1888 = vcmp.lt.s32.totalorder %v1632, 16
    %vm1889 = vcmp.lt.s32.totalorder %v1633, 16
    %vm1890 = vcmp.lt.s32.totalorder %v1634, 16
    %vm1891 = vcmp.lt.s32.totalorder %v1635, 16
    %vm1892 = vcmp.lt.s32.totalorder %v1636, 16
    %vm1893 = vcmp.lt.s32.totalorder %v1637, 16
    %vm1894 = vcmp.lt.s32.totalorder %v1638, 16
    %vm1895 = vcmp.lt.s32.totalorder %v1639, 16
    %vm1896 = vcmp.lt.s32.totalorder %v1640, 16
    %vm1897 = vcmp.lt.s32.totalorder %v1641, 16
    %vm1898 = vcmp.lt.s32.totalorder %v1642, 16
    %vm1899 = vcmp.lt.s32.totalorder %v1643, 16
    %vm1900 = vcmp.lt.s32.totalorder %v1644, 16
    %vm1901 = vcmp.lt.s32.totalorder %v1645, 16
    %vm1902 = vcmp.lt.s32.totalorder %v1646, 16
    %vm1903 = vcmp.lt.s32.totalorder %v1647, 16
    %vm1904 = vcmp.lt.s32.totalorder %v1648, 16
    %vm1905 = vcmp.lt.s32.totalorder %v1649, 16
    %vm1906 = vcmp.lt.s32.totalorder %v1650, 16
    %vm1907 = vcmp.lt.s32.totalorder %v1651, 16
    %vm1908 = vcmp.lt.s32.totalorder %v1652, 16
    %vm1909 = vcmp.lt.s32.totalorder %v1653, 16
    %vm1910 = vcmp.lt.s32.totalorder %v1654, 16
    %vm1911 = vcmp.lt.s32.totalorder %v1655, 16
    %vm1912 = vcmp.lt.s32.totalorder %v1656, 16
    %vm1913 = vcmp.lt.s32.totalorder %v1657, 16
    %vm1914 = vcmp.lt.s32.totalorder %v1658, 16
    %vm1915 = vcmp.lt.s32.totalorder %v1659, 16
    %vm1916 = vcmp.lt.s32.totalorder %v1660, 16
    %vm1917 = vcmp.lt.s32.totalorder %v1661, 16
    %vm1918 = vcmp.lt.s32.totalorder %v1662, 16
    %vm1919 = vcmp.lt.s32.totalorder %v1663, 16
    %vm1920 = vcmp.lt.s32.totalorder %v1664, 16
    %vm1921 = vcmp.lt.s32.totalorder %v1665, 16
    %vm1922 = vcmp.lt.s32.totalorder %v1666, 16
    %vm1923 = vcmp.lt.s32.totalorder %v1667, 16
    %vm1924 = vcmp.lt.s32.totalorder %v1668, 16
    %vm1925 = vcmp.lt.s32.totalorder %v1669, 16
    %vm1926 = vcmp.lt.s32.totalorder %v1670, 16
    %vm1927 = vcmp.lt.s32.totalorder %v1671, 16
    %vm1928 = vcmp.lt.s32.totalorder %v1672, 16
    %vm1929 = vcmp.lt.s32.totalorder %v1673, 16
    %vm1930 = vcmp.lt.s32.totalorder %v1674, 16
    %vm1931 = vcmp.lt.s32.totalorder %v1675, 16
    %vm1932 = vcmp.lt.s32.totalorder %v1676, 16
    %vm1933 = vcmp.lt.s32.totalorder %v1677, 16
    %vm1934 = vcmp.lt.s32.totalorder %v1678, 16
    %vm1935 = vcmp.lt.s32.totalorder %v1679, 16
    %vm1936 = vcmp.lt.s32.totalorder %v1680, 16
    %vm1937 = vcmp.lt.s32.totalorder %v1681, 16
    %vm1938 = vcmp.lt.s32.totalorder %v1682, 16
    %vm1939 = vcmp.lt.s32.totalorder %v1683, 16
    %vm1940 = vcmp.lt.s32.totalorder %v1684, 16
    %vm1941 = vcmp.lt.s32.totalorder %v1685, 16
    %vm1942 = vcmp.lt.s32.totalorder %v1686, 16
    %vm1943 = vcmp.lt.s32.totalorder %v1687, 16
    %vm1944 = vcmp.lt.s32.totalorder %v1688, 16
    %vm1945 = vcmp.lt.s32.totalorder %v1689, 16
    %vm1946 = vcmp.lt.s32.totalorder %v1690, 16
    %vm1947 = vcmp.lt.s32.totalorder %v1691, 16
    %vm1948 = vcmp.lt.s32.totalorder %v1692, 16
    %vm1949 = vcmp.lt.s32.totalorder %v1693, 16
    %vm1950 = vcmp.lt.s32.totalorder %v1694, 16
    %vm1951 = vcmp.lt.s32.totalorder %v1695, 16
    %vm1952 = vcmp.lt.s32.totalorder %v1696, 16
    %vm1953 = vcmp.lt.s32.totalorder %v1697, 16
    %vm1954 = vcmp.lt.s32.totalorder %v1698, 16
    %vm1955 = vcmp.lt.s32.totalorder %v1699, 16
    %vm1956 = vcmp.lt.s32.totalorder %v1700, 16
    %vm1957 = vcmp.lt.s32.totalorder %v1701, 16
    %vm1958 = vcmp.lt.s32.totalorder %v1702, 16
    %vm1959 = vcmp.lt.s32.totalorder %v1703, 16
    %vm1960 = vcmp.lt.s32.totalorder %v1704, 16
    %vm1961 = vcmp.lt.s32.totalorder %v1705, 16
    %vm1962 = vcmp.lt.s32.totalorder %v1706, 16
    %vm1963 = vcmp.lt.s32.totalorder %v1707, 16
    %vm1964 = vcmp.lt.s32.totalorder %v1708, 16
    %vm1965 = vcmp.lt.s32.totalorder %v1709, 16
    %vm1966 = vcmp.lt.s32.totalorder %v1710, 16
    %vm1967 = vcmp.lt.s32.totalorder %v1711, 16
    %vm1968 = vcmp.lt.s32.totalorder %v1712, 16
    %vm1969 = vcmp.lt.s32.totalorder %v1713, 16
    %vm1970 = vcmp.lt.s32.totalorder %v1714, 16
    %vm1971 = vcmp.lt.s32.totalorder %v1715, 16
    %vm1972 = vcmp.lt.s32.totalorder %v1716, 16
    %vm1973 = vcmp.lt.s32.totalorder %v1717, 16
    %vm1974 = vcmp.lt.s32.totalorder %v1718, 16
    %vm1975 = vcmp.lt.s32.totalorder %v1719, 16
    %vm1976 = vcmp.lt.s32.totalorder %v1720, 16
    %vm1977 = vcmp.lt.s32.totalorder %v1721, 16
    %vm1978 = vcmp.lt.s32.totalorder %v1722, 16
    %vm1979 = vcmp.lt.s32.totalorder %v1723, 16
    %vm1980 = vcmp.lt.s32.totalorder %v1724, 16
    %vm1981 = vcmp.lt.s32.totalorder %v1725, 16
    %vm1982 = vcmp.lt.s32.totalorder %v1726, 16
    %vm1983 = vcmp.lt.s32.totalorder %v1727, 16
    %vm1984 = vcmp.lt.s32.totalorder %v1728, 16
    %vm1985 = vcmp.lt.s32.totalorder %v1729, 16
    %vm1986 = vcmp.lt.s32.totalorder %v1730, 16
    %vm1987 = vcmp.lt.s32.totalorder %v1731, 16
    %vm1988 = vcmp.lt.s32.totalorder %v1732, 16
    %vm1989 = vcmp.lt.s32.totalorder %v1733, 16
    %vm1990 = vcmp.lt.s32.totalorder %v1734, 16
    %vm1991 = vcmp.lt.s32.totalorder %v1735, 16
    %vm1992 = vcmp.lt.s32.totalorder %v1736, 16
    %vm1993 = vcmp.lt.s32.totalorder %v1737, 16
    %vm1994 = vcmp.lt.s32.totalorder %v1738, 16
    %vm1995 = vcmp.lt.s32.totalorder %v1739, 16
    %vm1996 = vcmp.lt.s32.totalorder %v1740, 16
    %vm1997 = vcmp.lt.s32.totalorder %v1741, 16
    %vm1998 = vcmp.lt.s32.totalorder %v1742, 16
    %vm1999 = vcmp.lt.s32.totalorder %v1743, 16
    %vm2000 = vcmp.lt.s32.totalorder %v1744, 16
    %vm2001 = vcmp.lt.s32.totalorder %v1745, 16
    %vm2002 = vcmp.lt.s32.totalorder %v1746, 16
    %vm2003 = vcmp.lt.s32.totalorder %v1747, 16
    %vm2004 = vcmp.lt.s32.totalorder %v1748, 16
    %vm2005 = vcmp.lt.s32.totalorder %v1749, 16
    %vm2006 = vcmp.lt.s32.totalorder %v1750, 16
    %vm2007 = vcmp.lt.s32.totalorder %v1751, 16
    %vm2008 = vcmp.lt.s32.totalorder %v1752, 16
    %vm2009 = vcmp.lt.s32.totalorder %v1753, 16
    %vm2010 = vcmp.lt.s32.totalorder %v1754, 16
    %vm2011 = vcmp.lt.s32.totalorder %v1755, 16
    %vm2012 = vcmp.lt.s32.totalorder %v1756, 16
    %vm2013 = vcmp.lt.s32.totalorder %v1757, 16
    %vm2014 = vcmp.lt.s32.totalorder %v1758, 16
    %vm2015 = vcmp.lt.s32.totalorder %v1759, 16
    %vm2016 = vcmp.lt.s32.totalorder %v1760, 16
    %vm2017 = vcmp.lt.s32.totalorder %v1761, 16
    %vm2018 = vcmp.lt.s32.totalorder %v1762, 16
    %vm2019 = vcmp.lt.s32.totalorder %v1763, 16
    %vm2020 = vcmp.lt.s32.totalorder %v1764, 16
    %vm2021 = vcmp.lt.s32.totalorder %v1765, 16
    %vm2022 = vcmp.lt.s32.totalorder %v1766, 16
    %vm2023 = vcmp.lt.s32.totalorder %v1767, 16
    %vm2024 = vcmp.lt.s32.totalorder %v1768, 16
    %vm2025 = vcmp.lt.s32.totalorder %v1769, 16
    %vm2026 = vcmp.lt.s32.totalorder %v1770, 16
    %vm2027 = vcmp.lt.s32.totalorder %v1771, 16
    %vm2028 = vcmp.lt.s32.totalorder %v1772, 16
    %vm2029 = vcmp.lt.s32.totalorder %v1773, 16
    %vm2030 = vcmp.lt.s32.totalorder %v1774, 16
    %vm2031 = vcmp.lt.s32.totalorder %v1775, 16
    %vm2032 = vcmp.lt.s32.totalorder %v1776, 16
    %vm2033 = vcmp.lt.s32.totalorder %v1777, 16
    %vm2034 = vcmp.lt.s32.totalorder %v1778, 16
    %vm2035 = vcmp.lt.s32.totalorder %v1779, 16
    %vm2036 = vcmp.lt.s32.totalorder %v1780, 16
    %vm2037 = vcmp.lt.s32.totalorder %v1781, 16
    %vm2038 = vcmp.lt.s32.totalorder %v1782, 16
    %vm2039 = vcmp.lt.s32.totalorder %v1783, 16
    %vm2040 = vcmp.lt.s32.totalorder %v1784, 16
    %vm2041 = vcmp.lt.s32.totalorder %v1785, 16
    %vm2042 = vcmp.lt.s32.totalorder %v1786, 16
    %vm2043 = vcmp.lt.s32.totalorder %v1787, 16
    %vm2044 = vcmp.lt.s32.totalorder %v1788, 16
    %vm2045 = vcmp.lt.s32.totalorder %v1789, 16
    %vm2046 = vcmp.lt.s32.totalorder %v1790, 16
    %vm2047 = vcmp.lt.s32.totalorder %v1791, 16
    %vm2048 = vcmp.lt.s32.totalorder %v1792, 16
    %vm2049 = vcmp.lt.s32.totalorder %v1793, 16
    %vm2050 = vcmp.lt.s32.totalorder %v1794, 16
    %vm2051 = vcmp.lt.s32.totalorder %v1795, 16
    %vm2052 = vcmp.lt.s32.totalorder %v1796, 16
    %vm2053 = vcmp.lt.s32.totalorder %v1797, 16
    %vm2054 = vcmp.lt.s32.totalorder %v1798, 16
    %vm2055 = vcmp.lt.s32.totalorder %v1799, 16
    %vm2056 = vcmp.lt.s32.totalorder %v1800, 16
    %vm2057 = vcmp.lt.s32.totalorder %v1801, 16
    %vm2058 = vcmp.lt.s32.totalorder %v1802, 16
    %vm2059 = vcmp.lt.s32.totalorder %v1803, 16
    %vm2060 = vcmp.lt.s32.totalorder %v1804, 16
    %vm2061 = vcmp.lt.s32.totalorder %v1805, 16
    %vm2062 = vcmp.lt.s32.totalorder %v1806, 16
    %vm2063 = vcmp.lt.s32.totalorder %v1807, 16
    %vm2064 = vcmp.lt.s32.totalorder %v1808, 16
    %vm2065 = vcmp.lt.s32.totalorder %v1809, 16
    %vm2066 = vcmp.lt.s32.totalorder %v1810, 16
    %vm2067 = vcmp.lt.s32.totalorder %v1811, 16
    %vm2068 = vcmp.lt.s32.totalorder %v1812, 16
    %vm2069 = vcmp.lt.s32.totalorder %v1813, 16
    %vm2070 = vcmp.lt.s32.totalorder %v1814, 16
    %vm2071 = vcmp.lt.s32.totalorder %v1815, 16
    %vm2072 = vcmp.lt.s32.totalorder %v1816, 16
    %vm2073 = vcmp.lt.s32.totalorder %v1817, 16
    %vm2074 = vcmp.lt.s32.totalorder %v1818, 16
    %vm2075 = vcmp.lt.s32.totalorder %v1819, 16
    %vm2076 = vcmp.lt.s32.totalorder %v1820, 16
    %vm2077 = vcmp.lt.s32.totalorder %v1821, 16
    %vm2078 = vcmp.lt.s32.totalorder %v1822, 16
    %vm2079 = vcmp.lt.s32.totalorder %v1823, 16
    %vm2080 = vcmp.lt.s32.totalorder %v1824, 16
    %vm2081 = vcmp.lt.s32.totalorder %v1825, 16
    %vm2082 = vcmp.lt.s32.totalorder %v1826, 16
    %vm2083 = vcmp.lt.s32.totalorder %v1827, 16
    %vm2084 = vcmp.lt.s32.totalorder %v1828, 16
    %vm2085 = vcmp.lt.s32.totalorder %v1829, 16
    %vm2086 = vcmp.lt.s32.totalorder %v1830, 16
    %vm2087 = vcmp.lt.s32.totalorder %v1831, 16
    %vm2088 = vcmp.lt.s32.totalorder %v1832, 16
    %vm2089 = vcmp.lt.s32.totalorder %v1833, 16
    %vm2090 = vcmp.lt.s32.totalorder %v1834, 16
    %v2091 = vsel %vm1835, %v1064, 0.0
    %v2092 = vsel %vm1836, %v1065, 0.0
    %v2093 = vsel %vm1837, %v1066, 0.0
    %v2094 = vsel %vm1838, %v1067, 0.0
    %v2095 = vsel %vm1839, %v1068, 0.0
    %v2096 = vsel %vm1840, %v1069, 0.0
    %v2097 = vsel %vm1841, %v1070, 0.0
    %v2098 = vsel %vm1842, %v1071, 0.0
    %v2099 = vsel %vm1843, %v1072, 0.0
    %v2100 = vsel %vm1844, %v1073, 0.0
    %v2101 = vsel %vm1845, %v1074, 0.0
    %v2102 = vsel %vm1846, %v1075, 0.0
    %v2103 = vsel %vm1847, %v1076, 0.0
    %v2104 = vsel %vm1848, %v1077, 0.0
    %v2105 = vsel %vm1849, %v1078, 0.0
    %v2106 = vsel %vm1850, %v1079, 0.0
    %v2107 = vsel %vm1851, %v1080, 0.0
    %v2108 = vsel %vm1852, %v1081, 0.0
    %v2109 = vsel %vm1853, %v1082, 0.0
    %v2110 = vsel %vm1854, %v1083, 0.0
    %v2111 = vsel %vm1855, %v1084, 0.0
    %v2112 = vsel %vm1856, %v1085, 0.0
    %v2113 = vsel %vm1857, %v1086, 0.0
    %v2114 = vsel %vm1858, %v1087, 0.0
    %v2115 = vsel %vm1859, %v1088, 0.0
    %v2116 = vsel %vm1860, %v1089, 0.0
    %v2117 = vsel %vm1861, %v1090, 0.0
    %v2118 = vsel %vm1862, %v1091, 0.0
    %v2119 = vsel %vm1863, %v1092, 0.0
    %v2120 = vsel %vm1864, %v1093, 0.0
    %v2121 = vsel %vm1865, %v1094, 0.0
    %v2122 = vsel %vm1866, %v1095, 0.0
    %v2123 = vsel %vm1867, %v1096, 0.0
    %v2124 = vsel %vm1868, %v1097, 0.0
    %v2125 = vsel %vm1869, %v1098, 0.0
    %v2126 = vsel %vm1870, %v1099, 0.0
    %v2127 = vsel %vm1871, %v1100, 0.0
    %v2128 = vsel %vm1872, %v1101, 0.0
    %v2129 = vsel %vm1873, %v1102, 0.0
    %v2130 = vsel %vm1874, %v1103, 0.0
    %v2131 = vsel %vm1875, %v1104, 0.0
    %v2132 = vsel %vm1876, %v1105, 0.0
    %v2133 = vsel %vm1877, %v1106, 0.0
    %v2134 = vsel %vm1878, %v1107, 0.0
    %v2135 = vsel %vm1879, %v1108, 0.0
    %v2136 = vsel %vm1880, %v1109, 0.0
    %v2137 = vsel %vm1881, %v1110, 0.0
    %v2138 = vsel %vm1882, %v1111, 0.0
    %v2139 = vsel %vm1883, %v1112, 0.0
    %v2140 = vsel %vm1884, %v1113, 0.0
    %v2141 = vsel %vm1885, %v1114, 0.0
    %v2142 = vsel %vm1886, %v1115, 0.0
    %v2143 = vsel %vm1887, %v1116, 0.0
    %v2144 = vsel %vm1888, %v1117, 0.0
    %v2145 = vsel %vm1889, %v1118, 0.0
    %v2146 = vsel %vm1890, %v1119, 0.0
    %v2147 = vsel %vm1891, %v1120, 0.0
    %v2148 = vsel %vm1892, %v1121, 0.0
    %v2149 = vsel %vm1893, %v1122, 0.0
    %v2150 = vsel %vm1894, %v1123, 0.0
    %v2151 = vsel %vm1895, %v1124, 0.0
    %v2152 = vsel %vm1896, %v1125, 0.0
    %v2153 = vsel %vm1897, %v1126, 0.0
    %v2154 = vsel %vm1898, %v1127, 0.0
    %v2155 = vsel %vm1899, %v1128, 0.0
    %v2156 = vsel %vm1900, %v1129, 0.0
    %v2157 = vsel %vm1901, %v1130, 0.0
    %v2158 = vsel %vm1902, %v1131, 0.0
    %v2159 = vsel %vm1903, %v1132, 0.0
    %v2160 = vsel %vm1904, %v1133, 0.0
    %v2161 = vsel %vm1905, %v1134, 0.0
    %v2162 = vsel %vm1906, %v1135, 0.0
    %v2163 = vsel %vm1907, %v1136, 0.0
    %v2164 = vsel %vm1908, %v1137, 0.0
    %v2165 = vsel %vm1909, %v1138, 0.0
    %v2166 = vsel %vm1910, %v1139, 0.0
    %v2167 = vsel %vm1911, %v1140, 0.0
    %v2168 = vsel %vm1912, %v1141, 0.0
    %v2169 = vsel %vm1913, %v1142, 0.0
    %v2170 = vsel %vm1914, %v1143, 0.0
    %v2171 = vsel %vm1915, %v1144, 0.0
    %v2172 = vsel %vm1916, %v1145, 0.0
    %v2173 = vsel %vm1917, %v1146, 0.0
    %v2174 = vsel %vm1918, %v1147, 0.0
    %v2175 = vsel %vm1919, %v1148, 0.0
    %v2176 = vsel %vm1920, %v1149, 0.0
    %v2177 = vsel %vm1921, %v1150, 0.0
    %v2178 = vsel %vm1922, %v1151, 0.0
    %v2179 = vsel %vm1923, %v1152, 0.0
    %v2180 = vsel %vm1924, %v1153, 0.0
    %v2181 = vsel %vm1925, %v1154, 0.0
    %v2182 = vsel %vm1926, %v1155, 0.0
    %v2183 = vsel %vm1927, %v1156, 0.0
    %v2184 = vsel %vm1928, %v1157, 0.0
    %v2185 = vsel %vm1929, %v1158, 0.0
    %v2186 = vsel %vm1930, %v1159, 0.0
    %v2187 = vsel %vm1931, %v1160, 0.0
    %v2188 = vsel %vm1932, %v1161, 0.0
    %v2189 = vsel %vm1933, %v1162, 0.0
    %v2190 = vsel %vm1934, %v1163, 0.0
    %v2191 = vsel %vm1935, %v1164, 0.0
    %v2192 = vsel %vm1936, %v1165, 0.0
    %v2193 = vsel %vm1937, %v1166, 0.0
    %v2194 = vsel %vm1938, %v1167, 0.0
    %v2195 = vsel %vm1939, %v1168, 0.0
    %v2196 = vsel %vm1940, %v1169, 0.0
    %v2197 = vsel %vm1941, %v1170, 0.0
    %v2198 = vsel %vm1942, %v1171, 0.0
    %v2199 = vsel %vm1943, %v1172, 0.0
    %v2200 = vsel %vm1944, %v1173, 0.0
    %v2201 = vsel %vm1945, %v1174, 0.0
    %v2202 = vsel %vm1946, %v1175, 0.0
    %v2203 = vsel %vm1947, %v1176, 0.0
    %v2204 = vsel %vm1948, %v1177, 0.0
    %v2205 = vsel %vm1949, %v1178, 0.0
    %v2206 = vsel %vm1950, %v1179, 0.0
    %v2207 = vsel %vm1951, %v1180, 0.0
    %v2208 = vsel %vm1952, %v1181, 0.0
    %v2209 = vsel %vm1953, %v1182, 0.0
    %v2210 = vsel %vm1954, %v1183, 0.0
    %v2211 = vsel %vm1955, %v1184, 0.0
    %v2212 = vsel %vm1956, %v1185, 0.0
    %v2213 = vsel %vm1957, %v1186, 0.0
    %v2214 = vsel %vm1958, %v1187, 0.0
    %v2215 = vsel %vm1959, %v1188, 0.0
    %v2216 = vsel %vm1960, %v1189, 0.0
    %v2217 = vsel %vm1961, %v1190, 0.0
    %v2218 = vsel %vm1962, %v1191, 0.0
    %v2219 = vsel %vm1963, %v1192, 0.0
    %v2220 = vsel %vm1964, %v1193, 0.0
    %v2221 = vsel %vm1965, %v1194, 0.0
    %v2222 = vsel %vm1966, %v1195, 0.0
    %v2223 = vsel %vm1967, %v1196, 0.0
    %v2224 = vsel %vm1968, %v1197, 0.0
    %v2225 = vsel %vm1969, %v1198, 0.0
    %v2226 = vsel %vm1970, %v1199, 0.0
    %v2227 = vsel %vm1971, %v1200, 0.0
    %v2228 = vsel %vm1972, %v1201, 0.0
    %v2229 = vsel %vm1973, %v1202, 0.0
    %v2230 = vsel %vm1974, %v1203, 0.0
    %v2231 = vsel %vm1975, %v1204, 0.0
    %v2232 = vsel %vm1976, %v1205, 0.0
    %v2233 = vsel %vm1977, %v1206, 0.0
    %v2234 = vsel %vm1978, %v1207, 0.0
    %v2235 = vsel %vm1979, %v1208, 0.0
    %v2236 = vsel %vm1980, %v1209, 0.0
    %v2237 = vsel %vm1981, %v1210, 0.0
    %v2238 = vsel %vm1982, %v1211, 0.0
    %v2239 = vsel %vm1983, %v1212, 0.0
    %v2240 = vsel %vm1984, %v1213, 0.0
    %v2241 = vsel %vm1985, %v1214, 0.0
    %v2242 = vsel %vm1986, %v1215, 0.0
    %v2243 = vsel %vm1987, %v1216, 0.0
    %v2244 = vsel %vm1988, %v1217, 0.0
    %v2245 = vsel %vm1989, %v1218, 0.0
    %v2246 = vsel %vm1990, %v1219, 0.0
    %v2247 = vsel %vm1991, %v1220, 0.0
    %v2248 = vsel %vm1992, %v1221, 0.0
    %v2249 = vsel %vm1993, %v1222, 0.0
    %v2250 = vsel %vm1994, %v1223, 0.0
    %v2251 = vsel %vm1995, %v1224, 0.0
    %v2252 = vsel %vm1996, %v1225, 0.0
    %v2253 = vsel %vm1997, %v1226, 0.0
    %v2254 = vsel %vm1998, %v1227, 0.0
    %v2255 = vsel %vm1999, %v1228, 0.0
    %v2256 = vsel %vm2000, %v1229, 0.0
    %v2257 = vsel %vm2001, %v1230, 0.0
    %v2258 = vsel %vm2002, %v1231, 0.0
    %v2259 = vsel %vm2003, %v1232, 0.0
    %v2260 = vsel %vm2004, %v1233, 0.0
    %v2261 = vsel %vm2005, %v1234, 0.0
    %v2262 = vsel %vm2006, %v1235, 0.0
    %v2263 = vsel %vm2007, %v1236, 0.0
    %v2264 = vsel %vm2008, %v1237, 0.0
    %v2265 = vsel %vm2009, %v1238, 0.0
    %v2266 = vsel %vm2010, %v1239, 0.0
    %v2267 = vsel %vm2011, %v1240, 0.0
    %v2268 = vsel %vm2012, %v1241, 0.0
    %v2269 = vsel %vm2013, %v1242, 0.0
    %v2270 = vsel %vm2014, %v1243, 0.0
    %v2271 = vsel %vm2015, %v1244, 0.0
    %v2272 = vsel %vm2016, %v1245, 0.0
    %v2273 = vsel %vm2017, %v1246, 0.0
    %v2274 = vsel %vm2018, %v1247, 0.0
    %v2275 = vsel %vm2019, %v1248, 0.0
    %v2276 = vsel %vm2020, %v1249, 0.0
    %v2277 = vsel %vm2021, %v1250, 0.0
    %v2278 = vsel %vm2022, %v1251, 0.0
    %v2279 = vsel %vm2023, %v1252, 0.0
    %v2280 = vsel %vm2024, %v1253, 0.0
    %v2281 = vsel %vm2025, %v1254, 0.0
    %v2282 = vsel %vm2026, %v1255, 0.0
    %v2283 = vsel %vm2027, %v1256, 0.0
    %v2284 = vsel %vm2028, %v1257, 0.0
    %v2285 = vsel %vm2029, %v1258, 0.0
    %v2286 = vsel %vm2030, %v1259, 0.0
    %v2287 = vsel %vm2031, %v1260, 0.0
    %v2288 = vsel %vm2032, %v1261, 0.0
    %v2289 = vsel %vm2033, %v1262, 0.0
    %v2290 = vsel %vm2034, %v1263, 0.0
    %v2291 = vsel %vm2035, %v1264, 0.0
    %v2292 = vsel %vm2036, %v1265, 0.0
    %v2293 = vsel %vm2037, %v1266, 0.0
    %v2294 = vsel %vm2038, %v1267, 0.0
    %v2295 = vsel %vm2039, %v1268, 0.0
    %v2296 = vsel %vm2040, %v1269, 0.0
    %v2297 = vsel %vm2041, %v1270, 0.0
    %v2298 = vsel %vm2042, %v1271, 0.0
    %v2299 = vsel %vm2043, %v1272, 0.0
    %v2300 = vsel %vm2044, %v1273, 0.0
    %v2301 = vsel %vm2045, %v1274, 0.0
    %v2302 = vsel %vm2046, %v1275, 0.0
    %v2303 = vsel %vm2047, %v1276, 0.0
    %v2304 = vsel %vm2048, %v1277, 0.0
    %v2305 = vsel %vm2049, %v1278, 0.0
    %v2306 = vsel %vm2050, %v1279, 0.0
    %v2307 = vsel %vm2051, %v1280, 0.0
    %v2308 = vsel %vm2052, %v1281, 0.0
    %v2309 = vsel %vm2053, %v1282, 0.0
    %v2310 = vsel %vm2054, %v1283, 0.0
    %v2311 = vsel %vm2055, %v1284, 0.0
    %v2312 = vsel %vm2056, %v1285, 0.0
    %v2313 = vsel %vm2057, %v1286, 0.0
    %v2314 = vsel %vm2058, %v1287, 0.0
    %v2315 = vsel %vm2059, %v1288, 0.0
    %v2316 = vsel %vm2060, %v1289, 0.0
    %v2317 = vsel %vm2061, %v1290, 0.0
    %v2318 = vsel %vm2062, %v1291, 0.0
    %v2319 = vsel %vm2063, %v1292, 0.0
    %v2320 = vsel %vm2064, %v1293, 0.0
    %v2321 = vsel %vm2065, %v1294, 0.0
    %v2322 = vsel %vm2066, %v1295, 0.0
    %v2323 = vsel %vm2067, %v1296, 0.0
    %v2324 = vsel %vm2068, %v1297, 0.0
    %v2325 = vsel %vm2069, %v1298, 0.0
    %v2326 = vsel %vm2070, %v1299, 0.0
    %v2327 = vsel %vm2071, %v1300, 0.0
    %v2328 = vsel %vm2072, %v1301, 0.0
    %v2329 = vsel %vm2073, %v1302, 0.0
    %v2330 = vsel %vm2074, %v1303, 0.0
    %v2331 = vsel %vm2075, %v1304, 0.0
    %v2332 = vsel %vm2076, %v1305, 0.0
    %v2333 = vsel %vm2077, %v1306, 0.0
    %v2334 = vsel %vm2078, %v1307, 0.0
    %v2335 = vsel %vm2079, %v1308, 0.0
    %v2336 = vsel %vm2080, %v1309, 0.0
    %v2337 = vsel %vm2081, %v1310, 0.0
    %v2338 = vsel %vm2082, %v1311, 0.0
    %v2339 = vsel %vm2083, %v1312, 0.0
    %v2340 = vsel %vm2084, %v1313, 0.0
    %v2341 = vsel %vm2085, %v1314, 0.0
    %v2342 = vsel %vm2086, %v1315, 0.0
    %v2343 = vsel %vm2087, %v1316, 0.0
    %v2344 = vsel %vm2088, %v1317, 0.0
    %v2345 = vsel %vm2089, %v1318, 0.0
    %v2346 = vsel %vm2090, %v1319, 0.0
    %v2347 = vadd.f32 %v2091, %v2092
    %v2348 = vadd.f32 %v2347, %v2093
    %v2349 = vadd.f32 %v2348, %v2094
    %v2350 = vadd.f32 %v2349, %v2095
    %v2351 = vadd.f32 %v2350, %v2096
    %v2352 = vadd.f32 %v2351, %v2097
    %v2353 = vadd.f32 %v2352, %v2098
    %v2354 = vadd.f32 %v2353, %v2099
    %v2355 = vadd.f32 %v2354, %v2100
    %v2356 = vadd.f32 %v2355, %v2101
    %v2357 = vadd.f32 %v2356, %v2102
    %v2358 = vadd.f32 %v2357, %v2103
    %v2359 = vadd.f32 %v2358, %v2104
    %v2360 = vadd.f32 %v2359, %v2105
    %v2361 = vadd.f32 %v2360, %v2106
    %v2362 = vadd.f32 %v2361, %v2107
    %v2363 = vadd.f32 %v2362, %v2108
    %v2364 = vadd.f32 %v2363, %v2109
    %v2365 = vadd.f32 %v2364, %v2110
    %v2366 = vadd.f32 %v2365, %v2111
    %v2367 = vadd.f32 %v2366, %v2112
    %v2368 = vadd.f32 %v2367, %v2113
    %v2369 = vadd.f32 %v2368, %v2114
    %v2370 = vadd.f32 %v2369, %v2115
    %v2371 = vadd.f32 %v2370, %v2116
    %v2372 = vadd.f32 %v2371, %v2117
    %v2373 = vadd.f32 %v2372, %v2118
    %v2374 = vadd.f32 %v2373, %v2119
    %v2375 = vadd.f32 %v2374, %v2120
    %v2376 = vadd.f32 %v2375, %v2121
    %v2377 = vadd.f32 %v2376, %v2122
    %v2378 = vadd.f32 %v2377, %v2123
    %v2379 = vadd.f32 %v2378, %v2124
    %v2380 = vadd.f32 %v2379, %v2125
    %v2381 = vadd.f32 %v2380, %v2126
    %v2382 = vadd.f32 %v2381, %v2127
    %v2383 = vadd.f32 %v2382, %v2128
    %v2384 = vadd.f32 %v2383, %v2129
    %v2385 = vadd.f32 %v2384, %v2130
    %v2386 = vadd.f32 %v2385, %v2131
    %v2387 = vadd.f32 %v2386, %v2132
    %v2388 = vadd.f32 %v2387, %v2133
    %v2389 = vadd.f32 %v2388, %v2134
    %v2390 = vadd.f32 %v2389, %v2135
    %v2391 = vadd.f32 %v2390, %v2136
    %v2392 = vadd.f32 %v2391, %v2137
    %v2393 = vadd.f32 %v2392, %v2138
    %v2394 = vadd.f32 %v2393, %v2139
    %v2395 = vadd.f32 %v2394, %v2140
    %v2396 = vadd.f32 %v2395, %v2141
    %v2397 = vadd.f32 %v2396, %v2142
    %v2398 = vadd.f32 %v2397, %v2143
    %v2399 = vadd.f32 %v2398, %v2144
    %v2400 = vadd.f32 %v2399, %v2145
    %v2401 = vadd.f32 %v2400, %v2146
    %v2402 = vadd.f32 %v2401, %v2147
    %v2403 = vadd.f32 %v2402, %v2148
    %v2404 = vadd.f32 %v2403, %v2149
    %v2405 = vadd.f32 %v2404, %v2150
    %v2406 = vadd.f32 %v2405, %v2151
    %v2407 = vadd.f32 %v2406, %v2152
    %v2408 = vadd.f32 %v2407, %v2153
    %v2409 = vadd.f32 %v2408, %v2154
    %v2410 = vadd.f32 %v2409, %v2155
    %v2411 = vadd.f32 %v2410, %v2156
    %v2412 = vadd.f32 %v2411, %v2157
    %v2413 = vadd.f32 %v2412, %v2158
    %v2414 = vadd.f32 %v2413, %v2159
    %v2415 = vadd.f32 %v2414, %v2160
    %v2416 = vadd.f32 %v2415, %v2161
    %v2417 = vadd.f32 %v2416, %v2162
    %v2418 = vadd.f32 %v2417, %v2163
    %v2419 = vadd.f32 %v2418, %v2164
    %v2420 = vadd.f32 %v2419, %v2165
    %v2421 = vadd.f32 %v2420, %v2166
    %v2422 = vadd.f32 %v2421, %v2167
    %v2423 = vadd.f32 %v2422, %v2168
    %v2424 = vadd.f32 %v2423, %v2169
    %v2425 = vadd.f32 %v2424, %v2170
    %v2426 = vadd.f32 %v2425, %v2171
    %v2427 = vadd.f32 %v2426, %v2172
    %v2428 = vadd.f32 %v2427, %v2173
    %v2429 = vadd.f32 %v2428, %v2174
    %v2430 = vadd.f32 %v2429, %v2175
    %v2431 = vadd.f32 %v2430, %v2176
    %v2432 = vadd.f32 %v2431, %v2177
    %v2433 = vadd.f32 %v2432, %v2178
    %v2434 = vadd.f32 %v2433, %v2179
    %v2435 = vadd.f32 %v2434, %v2180
    %v2436 = vadd.f32 %v2435, %v2181
    %v2437 = vadd.f32 %v2436, %v2182
    %v2438 = vadd.f32 %v2437, %v2183
    %v2439 = vadd.f32 %v2438, %v2184
    %v2440 = vadd.f32 %v2439, %v2185
    %v2441 = vadd.f32 %v2440, %v2186
    %v2442 = vadd.f32 %v2441, %v2187
    %v2443 = vadd.f32 %v2442, %v2188
    %v2444 = vadd.f32 %v2443, %v2189
    %v2445 = vadd.f32 %v2444, %v2190
    %v2446 = vadd.f32 %v2445, %v2191
    %v2447 = vadd.f32 %v2446, %v2192
    %v2448 = vadd.f32 %v2447, %v2193
    %v2449 = vadd.f32 %v2448, %v2194
    %v2450 = vadd.f32 %v2449, %v2195
    %v2451 = vadd.f32 %v2450, %v2196
    %v2452 = vadd.f32 %v2451, %v2197
    %v2453 = vadd.f32 %v2452, %v2198
    %v2454 = vadd.f32 %v2453, %v2199
    %v2455 = vadd.f32 %v2454, %v2200
    %v2456 = vadd.f32 %v2455, %v2201
    %v2457 = vadd.f32 %v2456, %v2202
    %v2458 = vadd.f32 %v2457, %v2203
    %v2459 = vadd.f32 %v2458, %v2204
    %v2460 = vadd.f32 %v2459, %v2205
    %v2461 = vadd.f32 %v2460, %v2206
    %v2462 = vadd.f32 %v2461, %v2207
    %v2463 = vadd.f32 %v2462, %v2208
    %v2464 = vadd.f32 %v2463, %v2209
    %v2465 = vadd.f32 %v2464, %v2210
    %v2466 = vadd.f32 %v2465, %v2211
    %v2467 = vadd.f32 %v2466, %v2212
    %v2468 = vadd.f32 %v2467, %v2213
    %v2469 = vadd.f32 %v2468, %v2214
    %v2470 = vadd.f32 %v2469, %v2215
    %v2471 = vadd.f32 %v2470, %v2216
    %v2472 = vadd.f32 %v2471, %v2217
    %v2473 = vadd.f32 %v2472, %v2218
    %v2474 = vadd.f32 %v2473, %v2219
    %v2475 = vadd.f32 %v2474, %v2220
    %v2476 = vadd.f32 %v2475, %v2221
    %v2477 = vadd.f32 %v2476, %v2222
    %v2478 = vadd.f32 %v2477, %v2223
    %v2479 = vadd.f32 %v2478, %v2224
    %v2480 = vadd.f32 %v2479, %v2225
    %v2481 = vadd.f32 %v2480, %v2226
    %v2482 = vadd.f32 %v2481, %v2227
    %v2483 = vadd.f32 %v2482, %v2228
    %v2484 = vadd.f32 %v2483, %v2229
    %v2485 = vadd.f32 %v2484, %v2230
    %v2486 = vadd.f32 %v2485, %v2231
    %v2487 = vadd.f32 %v2486, %v2232
    %v2488 = vadd.f32 %v2487, %v2233
    %v2489 = vadd.f32 %v2488, %v2234
    %v2490 = vadd.f32 %v2489, %v2235
    %v2491 = vadd.f32 %v2490, %v2236
    %v2492 = vadd.f32 %v2491, %v2237
    %v2493 = vadd.f32 %v2492, %v2238
    %v2494 = vadd.f32 %v2493, %v2239
    %v2495 = vadd.f32 %v2494, %v2240
    %v2496 = vadd.f32 %v2495, %v2241
    %v2497 = vadd.f32 %v2496, %v2242
    %v2498 = vadd.f32 %v2497, %v2243
    %v2499 = vadd.f32 %v2498, %v2244
    %v2500 = vadd.f32 %v2499, %v2245
    %v2501 = vadd.f32 %v2500, %v2246
    %v2502 = vadd.f32 %v2501, %v2247
    %v2503 = vadd.f32 %v2502, %v2248
    %v2504 = vadd.f32 %v2503, %v2249
    %v2505 = vadd.f32 %v2504, %v2250
    %v2506 = vadd.f32 %v2505, %v2251
    %v2507 = vadd.f32 %v2506, %v2252
    %v2508 = vadd.f32 %v2507, %v2253
    %v2509 = vadd.f32 %v2508, %v2254
    %v2510 = vadd.f32 %v2509, %v2255
    %v2511 = vadd.f32 %v2510, %v2256
    %v2512 = vadd.f32 %v2511, %v2257
    %v2513 = vadd.f32 %v2512, %v2258
    %v2514 = vadd.f32 %v2513, %v2259
    %v2515 = vadd.f32 %v2514, %v2260
    %v2516 = vadd.f32 %v2515, %v2261
    %v2517 = vadd.f32 %v2516, %v2262
    %v2518 = vadd.f32 %v2517, %v2263
    %v2519 = vadd.f32 %v2518, %v2264
    %v2520 = vadd.f32 %v2519, %v2265
    %v2521 = vadd.f32 %v2520, %v2266
    %v2522 = vadd.f32 %v2521, %v2267
    %v2523 = vadd.f32 %v2522, %v2268
    %v2524 = vadd.f32 %v2523, %v2269
    %v2525 = vadd.f32 %v2524, %v2270
    %v2526 = vadd.f32 %v2525, %v2271
    %v2527 = vadd.f32 %v2526, %v2272
    %v2528 = vadd.f32 %v2527, %v2273
    %v2529 = vadd.f32 %v2528, %v2274
    %v2530 = vadd.f32 %v2529, %v2275
    %v2531 = vadd.f32 %v2530, %v2276
    %v2532 = vadd.f32 %v2531, %v2277
    %v2533 = vadd.f32 %v2532, %v2278
    %v2534 = vadd.f32 %v2533, %v2279
    %v2535 = vadd.f32 %v2534, %v2280
    %v2536 = vadd.f32 %v2535, %v2281
    %v2537 = vadd.f32 %v2536, %v2282
    %v2538 = vadd.f32 %v2537, %v2283
    %v2539 = vadd.f32 %v2538, %v2284
    %v2540 = vadd.f32 %v2539, %v2285
    %v2541 = vadd.f32 %v2540, %v2286
    %v2542 = vadd.f32 %v2541, %v2287
    %v2543 = vadd.f32 %v2542, %v2288
    %v2544 = vadd.f32 %v2543, %v2289
    %v2545 = vadd.f32 %v2544, %v2290
    %v2546 = vadd.f32 %v2545, %v2291
    %v2547 = vadd.f32 %v2546, %v2292
    %v2548 = vadd.f32 %v2547, %v2293
    %v2549 = vadd.f32 %v2548, %v2294
    %v2550 = vadd.f32 %v2549, %v2295
    %v2551 = vadd.f32 %v2550, %v2296
    %v2552 = vadd.f32 %v2551, %v2297
    %v2553 = vadd.f32 %v2552, %v2298
    %v2554 = vadd.f32 %v2553, %v2299
    %v2555 = vadd.f32 %v2554, %v2300
    %v2556 = vadd.f32 %v2555, %v2301
    %v2557 = vadd.f32 %v2556, %v2302
    %v2558 = vadd.f32 %v2557, %v2303
    %v2559 = vadd.f32 %v2558, %v2304
    %v2560 = vadd.f32 %v2559, %v2305
    %v2561 = vadd.f32 %v2560, %v2306
    %v2562 = vadd.f32 %v2561, %v2307
    %v2563 = vadd.f32 %v2562, %v2308
    %v2564 = vadd.f32 %v2563, %v2309
    %v2565 = vadd.f32 %v2564, %v2310
    %v2566 = vadd.f32 %v2565, %v2311
    %v2567 = vadd.f32 %v2566, %v2312
    %v2568 = vadd.f32 %v2567, %v2313
    %v2569 = vadd.f32 %v2568, %v2314
    %v2570 = vadd.f32 %v2569, %v2315
    %v2571 = vadd.f32 %v2570, %v2316
    %v2572 = vadd.f32 %v2571, %v2317
    %v2573 = vadd.f32 %v2572, %v2318
    %v2574 = vadd.f32 %v2573, %v2319
    %v2575 = vadd.f32 %v2574, %v2320
    %v2576 = vadd.f32 %v2575, %v2321
    %v2577 = vadd.f32 %v2576, %v2322
    %v2578 = vadd.f32 %v2577, %v2323
    %v2579 = vadd.f32 %v2578, %v2324
    %v2580 = vadd.f32 %v2579, %v2325
    %v2581 = vadd.f32 %v2580, %v2326
    %v2582 = vadd.f32 %v2581, %v2327
    %v2583 = vadd.f32 %v2582, %v2328
    %v2584 = vadd.f32 %v2583, %v2329
    %v2585 = vadd.f32 %v2584, %v2330
    %v2586 = vadd.f32 %v2585, %v2331
    %v2587 = vadd.f32 %v2586, %v2332
    %v2588 = vadd.f32 %v2587, %v2333
    %v2589 = vadd.f32 %v2588, %v2334
    %v2590 = vadd.f32 %v2589, %v2335
    %v2591 = vadd.f32 %v2590, %v2336
    %v2592 = vadd.f32 %v2591, %v2337
    %v2593 = vadd.f32 %v2592, %v2338
    %v2594 = vadd.f32 %v2593, %v2339
    %v2595 = vadd.f32 %v2594, %v2340
    %v2596 = vadd.f32 %v2595, %v2341
    %v2597 = vadd.f32 %v2596, %v2342
    %v2598 = vadd.f32 %v2597, %v2343
    %v2599 = vadd.f32 %v2598, %v2344
    %v2600 = vadd.f32 %v2599, %v2345
    %v2601 = vadd.f32 %v2600, %v2346
    %2602 = vst [vmem:[#allocation7] sm:$0xff] %v2601
    // Predicated region
    $region18: #{tpu_custom_call.1} parent=1 // pred_check
      _
    $region19: #{tpu_custom_call.1} parent=1 // pred_check_branch
      %2604 = sbr.rel (0) target = $region21
    $region20: #{tpu_custom_call.1} parent=1 // pred_region
      %s2606 = ssub.s32 128, 128
      %2607 = vsyncadd [#allocation4], %s2606
      %s2609 = sshll.u32 [#allocation7], 4
      %s2610 = int_to_ptr.vmem [resolvable:$true] %s2609
      %2612 = dma.vmem_to_hbm [thread:$0]  %s2610, 128, %s2, [#allocation4]
    $region21: #{tpu_custom_call.1} parent=1 // pred_fallthru
      _
    // Predicated region
    $region22: #{tpu_custom_call.1} parent=1 // pred_check
      _
    $region23: #{tpu_custom_call.1} parent=1 // pred_check_branch
      %2614 = sbr.rel (0) target = $region25
    $region24: #{tpu_custom_call.1} parent=1 // pred_region
      %2615 = dma.done [#allocation4], 128
    $region25: #{tpu_custom_call.1} parent=1 // pred_fallthru
      _
    %2616 = vsyncpa [#allocation3], 1
    %2617 = vsyncpa [#allocation6], 1
    %2618 = vsyncpa [#allocation4], 1

</llo_original>
